<compile_context>
chip_gen: v6e
topology: v6e:2x2x1
jax: 0.10.0
libtpu: 0.0.40
codegen_flags: <defaults>
</compile_context>

<pallas_src>
import functools
import math

import jax
import jax.numpy as jnp
from jax.experimental import pallas as pl
from jax.experimental.pallas import tpu as pltpu


def _gumbel_quantize_kernel(z_ref, g_ref, w_ref, b_ref, embT_ref,
                            zq_ref, kl_ref, ind_ref,
                            *, inv_temp, n_embed, log_n_embed, hard):
    # z_ref   : (C, tm)  f32   input block, tokens on lanes
    # g_ref   : (N, tm)  bf16  pre-sampled Gumbel(0,1) noise
    # w_ref   : (N, C)   f32   1x1-conv weight
    # b_ref   : (N, 1)   f32   1x1-conv bias (column)
    # embT_ref: (D, N)   f32   codebook, transposed
    # zq_ref  : (D, tm)  f32   quantized features (transposed), lane-dense
    # kl_ref  : (1, tm)  f32   per-token (un-weighted) KL term, lane-dense
    # ind_ref : (1, tm)  i32   per-token code index, lane-dense

    # --- 1x1 conv as a matmul over channels (MXU is otherwise idle here) ---
    logits = jnp.dot(w_ref[...], z_ref[...],
                     preferred_element_type=jnp.float32) + b_ref[...]      # (N, tm)
    g = g_ref[...].astype(jnp.float32)                                     # (N, tm)

    # Sublane iota over the codebook axis; float copy so the arg-reduce uses float min.
    iota_i = jax.lax.broadcasted_iota(jnp.int32, logits.shape, 0)
    iota_f = iota_i.astype(jnp.float32)

    if hard:
        # Forward value of hard gumbel-softmax is exactly the one-hot of
        # argmax((logits + g)/temp) == argmax(logits + g): no softmax, no temp needed.
        scores = logits + g
        s_max = jnp.max(scores, axis=0, keepdims=True)
        idx_f = jnp.min(jnp.where(scores == s_max, iota_f, float(n_embed)),
                        axis=0, keepdims=True)                             # (1, tm)
        one_hot = (iota_f == idx_f).astype(jnp.float32)                    # (N, tm)
    else:
        y = (logits + g) * inv_temp
        y_max = jnp.max(y, axis=0, keepdims=True)
        e = jnp.exp(y - y_max)
        one_hot = e * pl.reciprocal(jnp.sum(e, axis=0, keepdims=True), approx=True)
        idx_f = jnp.min(jnp.where(y == y_max, iota_f, float(n_embed)),
                        axis=0, keepdims=True)

    # --- z_q^T = embed^T @ soft_one_hot : tokens stay on lanes -> lane-dense store ---
    zq_ref[...] = jnp.dot(embT_ref[...], one_hot,
                          preferred_element_type=jnp.float32)

    # --- KL(q || uniform) per token via log-sum-exp algebra:
    #     sum_n qy*log(qy*N) = S2/S1 - log(S1) + log(N)
    #     qe = exp(logits - max), S1 = sum(qe), S2 = sum(qe*(logits - max)).
    #     (drops the reference's 1e-10 epsilon; qy > 0 so the difference is ~1e-10)
    lm = jnp.max(logits, axis=0, keepdims=True)
    centered = logits - lm
    qe = jnp.exp(centered)
    s1 = jnp.sum(qe, axis=0, keepdims=True)
    s2 = jnp.sum(qe * centered, axis=0, keepdims=True)
    kl_ref[...] = s2 * pl.reciprocal(s1, approx=True) - jnp.log(s1) + log_n_embed

    ind_ref[...] = idx_f.astype(jnp.int32)


def _pick_tile(M, tm_max=1024):
    cands = [t for t in (2048, 1024, 512, 256, 128) if t <= tm_max]
    for t in cands:                       # prefer >= 2 tiles (megacore sharding on v7x)
        if M % t == 0 and M // t >= 2:
            return t
    for t in cands:
        if M % t == 0:
            return t
    raise ValueError(f"token count {M} must be a multiple of 128")


def gumbel_quantize_forward(z, proj_w, proj_b, embed_w, gumbel_noise,
                            *, temp, kl_weight, hard=True, tm=None):
    """Forward pass of GumbelQuantize.

    z:            (B, C, H, W) float32 (NCHW, like the Conv2d input)
    proj_w:       (n_embed, C, 1, 1)   1x1-conv weight
    proj_b:       (n_embed,)           1x1-conv bias
    embed_w:      (n_embed, D)         codebook
    gumbel_noise: (n_embed, B*H*W)     pre-sampled Gumbel(0,1) noise (token axis last)
    Returns (z_q (B, D, H, W), diff scalar, (None, None, ind (B, H, W))).
    """
    B, C, H, W = z.shape
    n_embed, D = embed_w.shape
    M = B * H * W
    assert gumbel_noise.shape == (n_embed, M)
    if tm is None:
        tm = _pick_tile(M)
    assert M % tm == 0 and tm % 128 == 0, "token count must tile into 128-multiples"

    # NCHW -> feature-major, tokens on lanes.
    z_t = jnp.transpose(z, (1, 0, 2, 3)).reshape(C, M).astype(jnp.float32)   # (C, M)
    w = proj_w.reshape(n_embed, C).astype(jnp.float32)                       # (N, C)
    b = proj_b.reshape(n_embed, 1).astype(jnp.float32)                       # (N, 1)
    emb_t = embed_w.astype(jnp.float32).T                                    # (D, N)
    # bf16 noise halves the dominant HBM input stream (512 -> 256 B/token).
    g = gumbel_noise.astype(jnp.bfloat16)                                    # (N, M)

    kernel = functools.partial(
        _gumbel_quantize_kernel,
        inv_temp=1.0 / float(temp), n_embed=n_embed,
        log_n_embed=math.log(float(n_embed)), hard=hard)

    zq_t, kl_row, ind_row = pl.pallas_call(
        kernel,
        out_shape=(jax.ShapeDtypeStruct((D, M), jnp.float32),
                   jax.ShapeDtypeStruct((1, M), jnp.float32),
                   jax.ShapeDtypeStruct((1, M), jnp.int32)),
        grid_spec=pltpu.PrefetchScalarGridSpec(
            num_scalar_prefetch=0,
            grid=(M // tm,),
            in_specs=[
                pl.BlockSpec((C, tm), lambda i: (0, i)),           # z tokens
                pl.BlockSpec((n_embed, tm), lambda i: (0, i)),     # gumbel noise (bf16)
                pl.BlockSpec((n_embed, C), lambda i: (0, 0)),      # proj weight
                pl.BlockSpec((n_embed, 1), lambda i: (0, 0)),      # proj bias
                pl.BlockSpec((D, n_embed), lambda i: (0, 0)),      # codebook^T
            ],
            out_specs=[
                pl.BlockSpec((D, tm), lambda i: (0, i)),           # z_q^T (lane-dense)
                pl.BlockSpec((1, tm), lambda i: (0, i)),           # per-token KL
                pl.BlockSpec((1, tm), lambda i: (0, i)),           # indices
            ],
        ),
        compiler_params=pltpu.CompilerParams(
            dimension_semantics=("parallel",)),
    )(z_t, g, w, b, emb_t)

    # back to PyTorch conventions
    z_q = jnp.transpose(zq_t.reshape(D, B, H, W), (1, 0, 2, 3))     # (B, D, H, W)
    diff = kl_weight * jnp.mean(kl_row)                             # scalar
    ind = ind_row.reshape(B, H, W)                                  # (B, H, W)
    return z_q, diff, (None, None, ind)


def _reference_forward(z, proj_w, proj_b, embed_w, gumbel_noise, *, kl_weight):
    """Plain-JAX eval-mode (hard=True) reference, using the same bf16-rounded noise."""
    B, C, H, W = z.shape
    N, D = embed_w.shape
    M = B * H * W
    zt = jnp.transpose(z, (0, 2, 3, 1)).reshape(M, C)
    logits = zt @ proj_w.reshape(N, C).T + proj_b                    # (M, N)
    g = gumbel_noise.astype(jnp.bfloat16).astype(jnp.float32).T      # (M, N)
    ind = jnp.argmax(logits + g, axis=-1)
    one_hot = jax.nn.one_hot(ind, N, dtype=jnp.float32)
    zq = one_hot @ embed_w                                           # (M, D)
    qy = jax.nn.softmax(logits, axis=-1)
    diff = kl_weight * jnp.mean(jnp.sum(qy * jnp.log(qy * N + 1e-10), axis=-1))
    zq = jnp.transpose(zq.reshape(B, H, W, D), (0, 3, 1, 2))
    return zq, diff, ind.reshape(B, H, W)


if __name__ == "__main__":
    # module hyper-parameters (synthetic, deterministic init)
    num_hiddens = 4
    embedding_dim = 32
    n_embed = 128
    kl_weight = 5e-4
    temp = 1.0

    B, H, W = 2, 16, 16
    M = B * H * W

    key = jax.random.PRNGKey(0)
    k_z, k_w, k_b, k_e, k_g = jax.random.split(key, 5)

    # input z: NCHW, like the PyTorch Conv2d input
    z = jax.random.normal(k_z, (B, num_hiddens, H, W), dtype=jnp.float32)

    # nn.Conv2d(num_hiddens, n_embed, 1): weight (n_embed, num_hiddens, 1, 1), bias (n_embed,)
    proj_w = 0.1 * jax.random.normal(k_w, (n_embed, num_hiddens, 1, 1), dtype=jnp.float32)
    proj_b = 0.1 * jax.random.normal(k_b, (n_embed,), dtype=jnp.float32)
    # nn.Embedding(n_embed, embedding_dim): weight (n_embed, embedding_dim)
    embed_w = jax.random.normal(k_e, (n_embed, embedding_dim), dtype=jnp.float32)

    # Gumbel noise sampled in plain JAX (glue), token axis last to match the kernel layout.
    gumbel_noise = jax.random.gumbel(k_g, (n_embed, M), dtype=jnp.float32)

    z_q, diff, (_, _, ind) = gumbel_quantize_forward(
        z, proj_w, proj_b, embed_w, gumbel_noise,
        temp=temp, kl_weight=kl_weight, hard=True)
    jax.block_until_ready((z_q, diff, ind))

    # ---- sanity checks ----
    assert z_q.shape == (B, embedding_dim, H, W)
    assert ind.shape == (B, H, W)
    assert bool(jnp.all(jnp.isfinite(z_q)))
    assert bool(jnp.isfinite(diff))
    assert bool(jnp.all((ind >= 0) & (ind < n_embed)))
    # hard one-hot => each output pixel equals a codebook row
    ref_pixel = embed_w[ind[0, 0, 0]]
    assert bool(jnp.allclose(z_q[0, :, 0, 0], ref_pixel, atol=1e-4))

    # against a plain-JAX reference (argmax may flip only on exact FP ties -> >=99% match)
    ref_zq, ref_diff, ref_ind = _reference_forward(
        z, proj_w, proj_b, embed_w, gumbel_noise, kl_weight=kl_weight)
    match = float(jnp.mean((ind == ref_ind).astype(jnp.float32)))
    assert match > 0.99, f"index match fraction too low: {match}"
    assert abs(float(diff) - float(ref_diff)) <= 5e-2 * abs(float(ref_diff)) + 1e-8

    print("KERNEL_OK")
</pallas_src>

<mosaic_0001>
module attributes {stable_mosaic.version = 11 : i64} {
  func.func @_gumbel_quantize_kernel(%arg0: i32, %arg1: memref<4x256xf32, #tpu.memory_space<vmem>>, %arg2: memref<128x256xbf16, #tpu.memory_space<vmem>>, %arg3: memref<128x4xf32, #tpu.memory_space<vmem>>, %arg4: memref<128x1xf32, #tpu.memory_space<vmem>>, %arg5: memref<32x128xf32, #tpu.memory_space<vmem>>, %arg6: memref<32x256xf32, #tpu.memory_space<vmem>>, %arg7: memref<1x256xf32, #tpu.memory_space<vmem>>, %arg8: memref<1x256xi32, #tpu.memory_space<vmem>>) attributes {dimension_semantics = [#tpu.dimension_semantics<parallel>], iteration_bounds = array<i64: 2>, scalar_prefetch = 0 : i64, scratch_operands = 0 : i64, tpu.core_type = #tpu.core_type<tc>, window_params = [{transform_indices = @transform_0, window_bounds = array<i64: 4, 256>}, {transform_indices = @transform_1, window_bounds = array<i64: 128, 256>}, {pipeline_mode = #tpu.pipeline_mode<synchronous>, transform_indices = @transform_2, window_bounds = array<i64: 128, 4>}, {pipeline_mode = #tpu.pipeline_mode<synchronous>, transform_indices = @transform_3, window_bounds = array<i64: 128, 1>}, {pipeline_mode = #tpu.pipeline_mode<synchronous>, transform_indices = @transform_4, window_bounds = array<i64: 32, 128>}, {transform_indices = @transform_5, window_bounds = array<i64: 32, 256>}, {transform_indices = @transform_6, window_bounds = array<i64: 1, 256>}, {transform_indices = @transform_7, window_bounds = array<i64: 1, 256>}]} {
    %c0 = arith.constant 0 : index
    %c0_0 = arith.constant 0 : index
    %0 = vector.load %arg3[%c0, %c0_0] : memref<128x4xf32, #tpu.memory_space<vmem>>, vector<128x4xf32>
    %c0_1 = arith.constant 0 : index
    %c0_2 = arith.constant 0 : index
    %1 = vector.load %arg1[%c0_1, %c0_2] : memref<4x256xf32, #tpu.memory_space<vmem>>, vector<4x256xf32>
    %cst = arith.constant dense<0.000000e+00> : vector<128x256xf32>
    %2 = tpu.matmul %0, %1, %cst {dimension_numbers = #tpu.dot_dimension_numbers<[1], [0], [0], [1], [0, 0, 1, 1], [], []>} : vector<128x4xf32>, vector<4x256xf32>, vector<128x256xf32> -> vector<128x256xf32>
    %c0_3 = arith.constant 0 : index
    %c0_4 = arith.constant 0 : index
    %3 = vector.load %arg4[%c0_3, %c0_4] : memref<128x1xf32, #tpu.memory_space<vmem>>, vector<128x1xf32>
    %4 = vector.broadcast %3 : vector<128x1xf32> to vector<128x256xf32>
    %5 = arith.addf %2, %4 : vector<128x256xf32>
    %c0_5 = arith.constant 0 : index
    %c0_6 = arith.constant 0 : index
    %6 = vector.load %arg2[%c0_5, %c0_6] : memref<128x256xbf16, #tpu.memory_space<vmem>>, vector<128x256xbf16>
    %7 = arith.extf %6 : vector<128x256xbf16> to vector<128x256xf32>
    %8 = tpu.iota {dimensions = array<i32: 0>} : vector<128x256xi32>
    %9 = arith.sitofp %8 : vector<128x256xi32> to vector<128x256xf32>
    %10 = arith.addf %5, %7 : vector<128x256xf32>
    %cst_7 = arith.constant dense<0xFF800000> : vector<256xf32>
    %11 = vector.multi_reduction <maximumf>, %10, %cst_7 [0] : vector<128x256xf32> to vector<256xf32>
    %12 = vector.shape_cast %11 : vector<256xf32> to vector<1x256xf32>
    %13 = vector.broadcast %12 : vector<1x256xf32> to vector<128x256xf32>
    %14 = arith.cmpf oeq, %10, %13 : vector<128x256xf32>
    %cst_8 = arith.constant 1.280000e+02 : f32
    %15 = vector.broadcast %cst_8 : f32 to vector<128x256xf32>
    %16 = arith.select %14, %9, %15 : vector<128x256xi1>, vector<128x256xf32>
    %cst_9 = arith.constant dense<0x7F800000> : vector<256xf32>
    %17 = vector.multi_reduction <minimumf>, %16, %cst_9 [0] : vector<128x256xf32> to vector<256xf32>
    %18 = vector.shape_cast %17 : vector<256xf32> to vector<1x256xf32>
    %19 = vector.broadcast %18 : vector<1x256xf32> to vector<128x256xf32>
    %20 = arith.cmpf oeq, %9, %19 : vector<128x256xf32>
    %21 = arith.extui %20 : vector<128x256xi1> to vector<128x256xi32>
    %22 = arith.sitofp %21 : vector<128x256xi32> to vector<128x256xf32>
    %c0_10 = arith.constant 0 : index
    %c0_11 = arith.constant 0 : index
    %23 = vector.load %arg5[%c0_10, %c0_11] : memref<32x128xf32, #tpu.memory_space<vmem>>, vector<32x128xf32>
    %cst_12 = arith.constant dense<0.000000e+00> : vector<32x256xf32>
    %24 = tpu.matmul %23, %22, %cst_12 {dimension_numbers = #tpu.dot_dimension_numbers<[1], [0], [0], [1], [0, 0, 1, 1], [], []>} : vector<32x128xf32>, vector<128x256xf32>, vector<32x256xf32> -> vector<32x256xf32>
    %c0_13 = arith.constant 0 : index
    %c0_14 = arith.constant 0 : index
    %25 = vector.load %arg6[%c0_13, %c0_14] : memref<32x256xf32, #tpu.memory_space<vmem>>, vector<32x256xf32>
    tpu.vector_store %arg6[%c0_13, %c0_14], %24 {strides = array<i32>} : memref<32x256xf32, #tpu.memory_space<vmem>>, vector<32x256xf32>,
    %cst_15 = arith.constant dense<0xFF800000> : vector<256xf32>
    %26 = vector.multi_reduction <maximumf>, %5, %cst_15 [0] : vector<128x256xf32> to vector<256xf32>
    %27 = vector.shape_cast %26 : vector<256xf32> to vector<1x256xf32>
    %28 = vector.broadcast %27 : vector<1x256xf32> to vector<128x256xf32>
    %29 = arith.subf %5, %28 : vector<128x256xf32>
    %30 = math.exp %29 : vector<128x256xf32>
    %cst_16 = arith.constant dense<0.000000e+00> : vector<256xf32>
    %31 = vector.multi_reduction <add>, %30, %cst_16 [0] : vector<128x256xf32> to vector<256xf32>
    %32 = vector.shape_cast %31 : vector<256xf32> to vector<1x256xf32>
    %33 = arith.mulf %30, %29 : vector<128x256xf32>
    %cst_17 = arith.constant dense<0.000000e+00> : vector<256xf32>
    %34 = vector.multi_reduction <add>, %33, %cst_17 [0] : vector<128x256xf32> to vector<256xf32>
    %35 = vector.shape_cast %34 : vector<256xf32> to vector<1x256xf32>
    %36 = tpu.reciprocal %32 {approx = true} : vector<1x256xf32> -> vector<1x256xf32>
    %37 = arith.mulf %35, %36 : vector<1x256xf32>
    %38 = math.log %32 : vector<1x256xf32>
    %39 = arith.subf %37, %38 : vector<1x256xf32>
    %cst_18 = arith.constant 4.85203028 : f32
    %40 = vector.broadcast %cst_18 : f32 to vector<1x256xf32>
    %41 = arith.addf %39, %40 : vector<1x256xf32>
    %c0_19 = arith.constant 0 : index
    %c0_20 = arith.constant 0 : index
    %42 = vector.load %arg7[%c0_19, %c0_20] : memref<1x256xf32, #tpu.memory_space<vmem>>, vector<1x256xf32>
    tpu.vector_store %arg7[%c0_19, %c0_20], %41 {strides = array<i32>} : memref<1x256xf32, #tpu.memory_space<vmem>>, vector<1x256xf32>,
    %43 = arith.fptosi %18 : vector<1x256xf32> to vector<1x256xi32>
    %c0_21 = arith.constant 0 : index
    %c0_22 = arith.constant 0 : index
    %44 = vector.load %arg8[%c0_21, %c0_22] : memref<1x256xi32, #tpu.memory_space<vmem>>, vector<1x256xi32>
    tpu.vector_store %arg8[%c0_21, %c0_22], %43 {strides = array<i32>} : memref<1x256xi32, #tpu.memory_space<vmem>>, vector<1x256xi32>,
    return
  }
  func.func @transform_0(%arg0: i32) -> (i32, i32) {
    %c0_i32 = arith.constant 0 : i32
    %c0_i32_0 = arith.constant 0 : i32
    return %c0_i32, %arg0 : i32, i32
  }
  func.func @transform_1(%arg0: i32) -> (i32, i32) {
    %c0_i32 = arith.constant 0 : i32
    %c0_i32_0 = arith.constant 0 : i32
    return %c0_i32, %arg0 : i32, i32
  }
  func.func @transform_2(%arg0: i32) -> (i32, i32) {
    %c0_i32 = arith.constant 0 : i32
    %c0_i32_0 = arith.constant 0 : i32
    %c0_i32_1 = arith.constant 0 : i32
    return %c0_i32, %c0_i32_0 : i32, i32
  }
  func.func @transform_3(%arg0: i32) -> (i32, i32) {
    %c0_i32 = arith.constant 0 : i32
    %c0_i32_0 = arith.constant 0 : i32
    %c0_i32_1 = arith.constant 0 : i32
    return %c0_i32, %c0_i32_0 : i32, i32
  }
  func.func @transform_4(%arg0: i32) -> (i32, i32) {
    %c0_i32 = arith.constant 0 : i32
    %c0_i32_0 = arith.constant 0 : i32
    %c0_i32_1 = arith.constant 0 : i32
    return %c0_i32, %c0_i32_0 : i32, i32
  }
  func.func @transform_5(%arg0: i32) -> (i32, i32) {
    %c0_i32 = arith.constant 0 : i32
    %c0_i32_0 = arith.constant 0 : i32
    return %c0_i32, %arg0 : i32, i32
  }
  func.func @transform_6(%arg0: i32) -> (i32, i32) {
    %c0_i32 = arith.constant 0 : i32
    %c0_i32_0 = arith.constant 0 : i32
    return %c0_i32, %arg0 : i32, i32
  }
  func.func @transform_7(%arg0: i32) -> (i32, i32) {
    %c0_i32 = arith.constant 0 : i32
    %c0_i32_0 = arith.constant 0 : i32
    return %c0_i32, %arg0 : i32, i32
  }
}

</mosaic_0001>

<llo_original>
// kernel: tpu_custom_call.1
$region0: #{tpu_custom_call.1}
  #allocation0 [shape = 'u32[]', space=smem, size = 0x4, offset = 0x4, fixed_abs, tag = 'smem constant byte address 0x4 - core index']
  #allocation1 [shape = 'u32[144,128]{1,0:T(1,128)}', space=vmem, size = 0x12000, scoped, tag = 'internal scratch']
  %s0 = inlined_call_operand.hbm [shape: f32[4,512], index: 0, kind: input, shape index: {}]
  %s1 = inlined_call_operand.vmem [shape: bf16[128,512], index: 1, kind: input, shape index: {}]
  %s2 = inlined_call_operand.vmem [shape: f32[128,4], index: 2, kind: input, shape index: {}]
  %s3 = inlined_call_operand.vmem [shape: f32[128,1], index: 3, kind: input, shape index: {}]
  %s4 = inlined_call_operand.hbm [shape: f32[32,128], index: 4, kind: input, shape index: {}]
  %s5 = inlined_call_operand.hbm [shape: f32[32,512], index: 5, kind: output, shape index: {0}]
  %s6 = inlined_call_operand.hbm [shape: f32[1,512], index: 6, kind: output, shape index: {1}]
  %s7 = inlined_call_operand.hbm [shape: s32[1,512], index: 7, kind: output, shape index: {2}]
  %8 = xla_tuple %s5, %s6, %s7
  %s9 = sld [smem:[#allocation0]]
  $region115: #{tpu_custom_call.1} parent=0
    _
  %s11 = ssub.s32 1, %s9
  %s12 = scalar_select 0, %s11, %s9
  $region1: #{tpu_custom_call.1} parent=0
    #allocation2 [shape = 'u8[8192]{0}', space=vmem, size = 0x2000, scoped, tag = 'input window, operand 0']
    #allocation3 [shape = 's32[2]{0}', space=sflag, size = 0x8, scoped, tag = 'scoped memory for tpu_custom_call.1']
    #allocation4 [shape = 's32[2]{0}', space=sflag, size = 0x8, scoped, tag = 'scoped memory for tpu_custom_call.1']
    #allocation5 [shape = 'u8[131072]{0}', space=vmem, size = 0x20000, scoped, tag = 'input window, operand 1']
    #allocation6 [shape = 'u8[16384]{0}', space=vmem, size = 0x4000, scoped, tag = 'input window, operand 4, single buffered']
    #allocation7 [shape = 's32[1]{0}', space=sflag, size = 0x4, scoped, tag = 'scoped memory for tpu_custom_call.1']
    #allocation8 [shape = 'u8[65536]{0}', space=vmem, size = 0x10000, scoped, tag = 'output window, operand 0']
    #allocation9 [shape = 'u8[2048]{0}', space=vmem, size = 0x800, scoped, tag = 'output window, operand 1']
    #allocation10 [shape = 's32[2]{0}', space=sflag, size = 0x8, scoped, tag = 'scoped memory for tpu_custom_call.1']
    #allocation11 [shape = 'u8[2048]{0}', space=vmem, size = 0x800, scoped, tag = 'output window, operand 2']
    %13 = vsyncpa [#allocation3], 0
    %s14 = scalar_lea.sflag [#allocation3], 1
    %15 = vsyncpa %s14, 0
    %16 = vsyncpa [#allocation7], 0
    %17 = vsyncpa [#allocation4], 0
    %s18 = scalar_lea.sflag [#allocation4], 1
    %19 = vsyncpa %s18, 0
    %20 = vsyncpa [#allocation10], 0
    %s21 = scalar_lea.sflag [#allocation10], 1
    %22 = vsyncpa %s21, 0
    loop: start=0, step=1, limit=4
    $region2: #{tpu_custom_call.1} parent=1 // loop_pre_header
      _
    $region3: #{tpu_custom_call.1} parent=1 // loop_header
      %s24 = sphi 0, %s28
      %p25 = scmp.ge.s32.totalorder %s24, 4
      %s34 = sphi 0, %s36
      %s37 = sphi 0, %s34
      %s38 = sphi 0, %s37
      %s54 = sphi 0, %s38
      %s60 = sphi 0, %s62
      %s63 = sphi 0, %s60
      %s64 = sphi 0, %s63
      %s80 = sphi 0, %s64
      %s84 = sphi 0, %s84
      %s86 = sphi 0, %s84
      %s87 = sphi 0, %s86
      %s101 = sphi 0, %s87
      %s105 = sphi 0, %s105
      %s107 = sphi 0, %s105
      %s108 = sphi 0, %s107
      %s122 = sphi 0, %s108
      %s126 = sphi 0, %s126
      %s128 = sphi 0, %s126
      %s129 = sphi 0, %s128
      %s143 = sphi 0, %s129
      %s149 = sphi 0, %s151
      %s152 = sphi 0, %s149
      %s153 = sphi 0, %s152
      %s169 = sphi 0, %s153
      %s175 = sphi 0, %s177
      %s178 = sphi 0, %s175
      %s179 = sphi 0, %s178
      %s195 = sphi 0, %s179
      %s201 = sphi 0, %s203
      %s204 = sphi 0, %s201
      %s205 = sphi 0, %s204
      %s221 = sphi 0, %s205
    $region4: #{tpu_custom_call.1} parent=1 // loop_header_branch
      %27 = sbr.rel (%p25) target = $region8
    $region5: #{tpu_custom_call.1} parent=1 // loop_body
      %s29 = ssub.s32 %s24, 1
      %s30 = ssub.s32 %s24, 2
      %s31 = sadd.s32 %s24, 1
      %s32 = ssub.s32 %s24, %s31
      %p33 = scmp.eq.s32.totalorder %s32, 0
      %s35 = sadd.s32 %s34, 1
      %s36 = scalar_select %p33, %s34, %s35
      %p39 = pneg %p33
      %p40 = scmp.eq.s32.totalorder %s24, 1
      %p41 = por %p39, %p40
      %p42 = scmp.ne.s32.totalorder %s34, %s37
      %p43 = scmp.eq.s32.totalorder %s24, 0
      %p44 = por %p42, %p43
      %p45 = scmp.ne.s32.totalorder %s34, %s37
      %p46 = scmp.eq.s32.totalorder %s29, 1
      %p47 = por %p45, %p46
      %p48 = scmp.ne.s32.totalorder %s37, %s38
      %p49 = scmp.eq.s32.totalorder %s29, 0
      %p50 = por %p48, %p49
      %p51 = scmp.ne.s32.totalorder %s37, %s38
      %p52 = scmp.eq.s32.totalorder %s30, 1
      %p53 = por %p51, %p52
      %p55 = scmp.ne.s32.totalorder %s38, %s54
      %p56 = scmp.eq.s32.totalorder %s30, 0
      %p57 = por %p55, %p56
      %s58 = ssub.s32 %s24, %s31
      %p59 = scmp.eq.s32.totalorder %s58, 0
      %s61 = sadd.s32 %s60, 1
      %s62 = scalar_select %p59, %s60, %s61
      %p65 = pneg %p59
      %p66 = scmp.eq.s32.totalorder %s24, 1
      %p67 = por %p65, %p66
      %p68 = scmp.ne.s32.totalorder %s60, %s63
      %p69 = scmp.eq.s32.totalorder %s24, 0
      %p70 = por %p68, %p69
      %p71 = scmp.ne.s32.totalorder %s60, %s63
      %p72 = scmp.eq.s32.totalorder %s29, 1
      %p73 = por %p71, %p72
      %p74 = scmp.ne.s32.totalorder %s63, %s64
      %p75 = scmp.eq.s32.totalorder %s29, 0
      %p76 = por %p74, %p75
      %p77 = scmp.ne.s32.totalorder %s63, %s64
      %p78 = scmp.eq.s32.totalorder %s30, 1
      %p79 = por %p77, %p78
      %p81 = scmp.ne.s32.totalorder %s64, %s80
      %p82 = scmp.eq.s32.totalorder %s30, 0
      %p83 = por %p81, %p82
      %s85 = sadd.s32 %s84, 1
      %p88 = scmp.eq.s32.totalorder %s24, 1
      %p89 = scmp.ne.s32.totalorder %s84, %s86
      %p90 = scmp.eq.s32.totalorder %s24, 0
      %p91 = por %p89, %p90
      %p92 = scmp.ne.s32.totalorder %s84, %s86
      %p93 = scmp.eq.s32.totalorder %s29, 1
      %p94 = por %p92, %p93
      %p95 = scmp.ne.s32.totalorder %s86, %s87
      %p96 = scmp.eq.s32.totalorder %s29, 0
      %p97 = por %p95, %p96
      %p98 = scmp.ne.s32.totalorder %s86, %s87
      %p99 = scmp.eq.s32.totalorder %s30, 1
      %p100 = por %p98, %p99
      %p102 = scmp.ne.s32.totalorder %s87, %s101
      %p103 = scmp.eq.s32.totalorder %s30, 0
      %p104 = por %p102, %p103
      %s106 = sadd.s32 %s105, 1
      %p109 = scmp.eq.s32.totalorder %s24, 1
      %p110 = scmp.ne.s32.totalorder %s105, %s107
      %p111 = scmp.eq.s32.totalorder %s24, 0
      %p112 = por %p110, %p111
      %p113 = scmp.ne.s32.totalorder %s105, %s107
      %p114 = scmp.eq.s32.totalorder %s29, 1
      %p115 = por %p113, %p114
      %p116 = scmp.ne.s32.totalorder %s107, %s108
      %p117 = scmp.eq.s32.totalorder %s29, 0
      %p118 = por %p116, %p117
      %p119 = scmp.ne.s32.totalorder %s107, %s108
      %p120 = scmp.eq.s32.totalorder %s30, 1
      %p121 = por %p119, %p120
      %p123 = scmp.ne.s32.totalorder %s108, %s122
      %p124 = scmp.eq.s32.totalorder %s30, 0
      %p125 = por %p123, %p124
      %s127 = sadd.s32 %s126, 1
      %p130 = scmp.eq.s32.totalorder %s24, 1
      %p131 = scmp.ne.s32.totalorder %s126, %s128
      %p132 = scmp.eq.s32.totalorder %s24, 0
      %p133 = por %p131, %p132
      %p134 = scmp.ne.s32.totalorder %s126, %s128
      %p135 = scmp.eq.s32.totalorder %s29, 1
      %p136 = por %p134, %p135
      %p137 = scmp.ne.s32.totalorder %s128, %s129
      %p138 = scmp.eq.s32.totalorder %s29, 0
      %p139 = por %p137, %p138
      %p140 = scmp.ne.s32.totalorder %s128, %s129
      %p141 = scmp.eq.s32.totalorder %s30, 1
      %p142 = por %p140, %p141
      %p144 = scmp.ne.s32.totalorder %s129, %s143
      %p145 = scmp.eq.s32.totalorder %s30, 0
      %p146 = por %p144, %p145
      %s147 = ssub.s32 %s24, %s31
      %p148 = scmp.eq.s32.totalorder %s147, 0
      %s150 = sadd.s32 %s149, 1
      %s151 = scalar_select %p148, %s149, %s150
      %p154 = pneg %p148
      %p155 = scmp.eq.s32.totalorder %s24, 1
      %p156 = por %p154, %p155
      %p157 = scmp.ne.s32.totalorder %s149, %s152
      %p158 = scmp.eq.s32.totalorder %s24, 0
      %p159 = por %p157, %p158
      %p160 = scmp.ne.s32.totalorder %s149, %s152
      %p161 = scmp.eq.s32.totalorder %s29, 1
      %p162 = por %p160, %p161
      %p163 = scmp.ne.s32.totalorder %s152, %s153
      %p164 = scmp.eq.s32.totalorder %s29, 0
      %p165 = por %p163, %p164
      %p166 = scmp.ne.s32.totalorder %s152, %s153
      %p167 = scmp.eq.s32.totalorder %s30, 1
      %p168 = por %p166, %p167
      %p170 = scmp.ne.s32.totalorder %s153, %s169
      %p171 = scmp.eq.s32.totalorder %s30, 0
      %p172 = por %p170, %p171
      %s173 = ssub.s32 %s24, %s31
      %p174 = scmp.eq.s32.totalorder %s173, 0
      %s176 = sadd.s32 %s175, 1
      %s177 = scalar_select %p174, %s175, %s176
      %p180 = pneg %p174
      %p181 = scmp.eq.s32.totalorder %s24, 1
      %p182 = por %p180, %p181
      %p183 = scmp.ne.s32.totalorder %s175, %s178
      %p184 = scmp.eq.s32.totalorder %s24, 0
      %p185 = por %p183, %p184
      %p186 = scmp.ne.s32.totalorder %s175, %s178
      %p187 = scmp.eq.s32.totalorder %s29, 1
      %p188 = por %p186, %p187
      %p189 = scmp.ne.s32.totalorder %s178, %s179
      %p190 = scmp.eq.s32.totalorder %s29, 0
      %p191 = por %p189, %p190
      %p192 = scmp.ne.s32.totalorder %s178, %s179
      %p193 = scmp.eq.s32.totalorder %s30, 1
      %p194 = por %p192, %p193
      %p196 = scmp.ne.s32.totalorder %s179, %s195
      %p197 = scmp.eq.s32.totalorder %s30, 0
      %p198 = por %p196, %p197
      %s199 = ssub.s32 %s24, %s31
      %p200 = scmp.eq.s32.totalorder %s199, 0
      %s202 = sadd.s32 %s201, 1
      %s203 = scalar_select %p200, %s201, %s202
      %p206 = pneg %p200
      %p207 = scmp.eq.s32.totalorder %s24, 1
      %p208 = por %p206, %p207
      %p209 = scmp.ne.s32.totalorder %s201, %s204
      %p210 = scmp.eq.s32.totalorder %s24, 0
      %p211 = por %p209, %p210
      %p212 = scmp.ne.s32.totalorder %s201, %s204
      %p213 = scmp.eq.s32.totalorder %s29, 1
      %p214 = por %p212, %p213
      %p215 = scmp.ne.s32.totalorder %s204, %s205
      %p216 = scmp.eq.s32.totalorder %s29, 0
      %p217 = por %p215, %p216
      %p218 = scmp.ne.s32.totalorder %s204, %s205
      %p219 = scmp.eq.s32.totalorder %s30, 1
      %p220 = por %p218, %p219
      %p222 = scmp.ne.s32.totalorder %s205, %s221
      %p223 = scmp.eq.s32.totalorder %s30, 0
      %p224 = por %p222, %p223
      %p225 = scmp.le.s32.totalorder 1, %s24
      %p226 = scmp.lt.s32.totalorder %s24, 3
      %p227 = pnand %p225, %p226
      %p228 = pneg %p227
      // Predicated region
      $region9: #{tpu_custom_call.1} parent=5 // pred_check
        _
      $region10: #{tpu_custom_call.1} parent=5 // pred_check_branch
        %230 = sbr.rel (%p227) target = $region12
      $region11: #{tpu_custom_call.1} parent=5 // pred_region
        %s231 = ssub.s32 %s24, 1
        // Predicated region
        $region13: #{tpu_custom_call.1} parent=11 // pred_check
          %p232 = pneg %p97
        $region14: #{tpu_custom_call.1} parent=11 // pred_check_branch
          %234 = sbr.rel (%p232) target = $region16
        $region15: #{tpu_custom_call.1} parent=11 // pred_region
          _
        $region16: #{tpu_custom_call.1} parent=11 // pred_fallthru
          _
        // Predicated region
        $region17: #{tpu_custom_call.1} parent=11 // pred_check
          %p235 = pneg %p118
        $region18: #{tpu_custom_call.1} parent=11 // pred_check_branch
          %237 = sbr.rel (%p235) target = $region20
        $region19: #{tpu_custom_call.1} parent=11 // pred_region
          _
        $region20: #{tpu_custom_call.1} parent=11 // pred_fallthru
          _
        // Predicated region
        $region21: #{tpu_custom_call.1} parent=11 // pred_check
          %p238 = pneg %p139
        $region22: #{tpu_custom_call.1} parent=11 // pred_check_branch
          %240 = sbr.rel (%p238) target = $region24
        $region23: #{tpu_custom_call.1} parent=11 // pred_region
          %s242 = ssub.s32 512, 512
          %243 = vsyncadd [#allocation7], %s242
          %s244 = sshll.u32 [#allocation6], 4
          %s245 = int_to_ptr.vmem [resolvable:$true] %s244
          %250 = dma.hbm_to_vmem [thread:$0]  %s4, 512, %s245, [#allocation7], 128, 128, 8
        $region24: #{tpu_custom_call.1} parent=11 // pred_fallthru
          _
      $region12: #{tpu_custom_call.1} parent=5 // pred_fallthru
        _
      %p251 = scmp.lt.s32.totalorder %s24, 2
      // Predicated region
      $region25: #{tpu_custom_call.1} parent=5 // pred_check
        %p252 = pneg %p251
      $region26: #{tpu_custom_call.1} parent=5 // pred_check_branch
        %254 = sbr.rel (%p252) target = $region28
      $region27: #{tpu_custom_call.1} parent=5 // pred_region
        // Predicated region
        $region29: #{tpu_custom_call.1} parent=27 // pred_check
          %p255 = pneg %p44
        $region30: #{tpu_custom_call.1} parent=27 // pred_check_branch
          %257 = sbr.rel (%p255) target = $region32
        $region31: #{tpu_custom_call.1} parent=27 // pred_region
          %s258 = sand.u32 %s34, 1
          %s259 = scalar_lea.sflag [#allocation3], %s258
          %s260 = sand.u32 %s34, 1
          %s261 = smul.addr %s260, 8
          %s262 = scalar_lea.vmem [#allocation2], %s261
          %s263 = smul.u32 2, %s24
          %s265 = ssub.s32 128, 128
          %266 = vsyncadd %s259, %s265
          %s267 = smul.addr %s263, 64
          %s268 = scalar_lea.hbm %s0, %s267
          %s270 = sshll.u32 %s262, 4
          %s271 = int_to_ptr.vmem [resolvable:$true] %s270
          %273 = dma.hbm_to_vmem [thread:$0]  %s268, 128, %s271, %s259
        $region32: #{tpu_custom_call.1} parent=27 // pred_fallthru
          _
        // Predicated region
        $region33: #{tpu_custom_call.1} parent=27 // pred_check
          %p274 = pneg %p70
        $region34: #{tpu_custom_call.1} parent=27 // pred_check_branch
          %276 = sbr.rel (%p274) target = $region36
        $region35: #{tpu_custom_call.1} parent=27 // pred_region
          %s277 = sand.u32 %s60, 1
          %s278 = sand.u32 %s60, 1
          %s279 = smul.addr %s278, 128
          %s280 = scalar_lea.vmem [#allocation5], %s279
          %s281 = smul.u32 2, %s24
          %s282 = smul.addr %s281, 4
          %s283 = scalar_lea.vmem %s1, %s282
          // Predicated region
          $region37: #{tpu_custom_call.1} parent=35 // pred_check
            _
          $region38: #{tpu_custom_call.1} parent=35 // pred_check_branch
            %285 = sbr.rel (0) target = $region40
          $region39: #{tpu_custom_call.1} parent=35 // pred_region
            // Predicated region
            $region41: #{tpu_custom_call.1} parent=39 // pred_check
              _
            $region42: #{tpu_custom_call.1} parent=39 // pred_check_branch
              %287 = sbr.rel (0) target = $region44
            $region43: #{tpu_custom_call.1} parent=39 // pred_region
              // Predicated region
              $region56: #{tpu_custom_call.1} parent=43 // pred_check
                _
              $region57: #{tpu_custom_call.1} parent=43 // pred_check_branch
                %333 = sbr.rel (0) target = $region59
              $region58: #{tpu_custom_call.1} parent=43 // pred_region
                loop: start=0, step=1, limit=1
                $region60: #{tpu_custom_call.1} parent=58 // loop_pre_header
                  _
                $region61: #{tpu_custom_call.1} parent=58 // loop_header
                  %s335 = sphi 0, %s339
                  %p336 = scmp.ge.s32.totalorder %s335, 1
                  %s340 = sphi %s283, %s283
                  %s341 = sphi %s280, %s280
                $region62: #{tpu_custom_call.1} parent=58 // loop_header_branch
                  %338 = sbr.rel (%p336) target = $region66
                $region63: #{tpu_custom_call.1} parent=58 // loop_body
                  %v342 = vld [vmem:[%s340] sm:$0xff]
                  %343 = vst [vmem:[%s341] sm:$0xff] %v342
                  %v344 = vld [vmem:[%s340 + $0x10] sm:$0xff]
                  %345 = vst [vmem:[%s341 + $0x8] sm:$0xff] %v344
                  %v346 = vld [vmem:[%s340 + $0x20] sm:$0xff]
                  %347 = vst [vmem:[%s341 + $0x10] sm:$0xff] %v346
                  %v348 = vld [vmem:[%s340 + $0x30] sm:$0xff]
                  %349 = vst [vmem:[%s341 + $0x18] sm:$0xff] %v348
                  %v350 = vld [vmem:[%s340 + $0x40] sm:$0xff]
                  %351 = vst [vmem:[%s341 + $0x20] sm:$0xff] %v350
                  %v352 = vld [vmem:[%s340 + $0x50] sm:$0xff]
                  %353 = vst [vmem:[%s341 + $0x28] sm:$0xff] %v352
                  %v354 = vld [vmem:[%s340 + $0x60] sm:$0xff]
                  %355 = vst [vmem:[%s341 + $0x30] sm:$0xff] %v354
                  %v356 = vld [vmem:[%s340 + $0x70] sm:$0xff]
                  %357 = vst [vmem:[%s341 + $0x38] sm:$0xff] %v356
                  %v358 = vld [vmem:[%s340 + $0x80] sm:$0xff]
                  %359 = vst [vmem:[%s341 + $0x40] sm:$0xff] %v358
                  %v360 = vld [vmem:[%s340 + $0x90] sm:$0xff]
                  %361 = vst [vmem:[%s341 + $0x48] sm:$0xff] %v360
                  %v362 = vld [vmem:[%s340 + $0xa0] sm:$0xff]
                  %363 = vst [vmem:[%s341 + $0x50] sm:$0xff] %v362
                  %v364 = vld [vmem:[%s340 + $0xb0] sm:$0xff]
                  %365 = vst [vmem:[%s341 + $0x58] sm:$0xff] %v364
                  %v366 = vld [vmem:[%s340 + $0xc0] sm:$0xff]
                  %367 = vst [vmem:[%s341 + $0x60] sm:$0xff] %v366
                  %v368 = vld [vmem:[%s340 + $0xd0] sm:$0xff]
                  %369 = vst [vmem:[%s341 + $0x68] sm:$0xff] %v368
                  %v370 = vld [vmem:[%s340 + $0xe0] sm:$0xff]
                  %371 = vst [vmem:[%s341 + $0x70] sm:$0xff] %v370
                  %v372 = vld [vmem:[%s340 + $0xf0] sm:$0xff]
                  %373 = vst [vmem:[%s341 + $0x78] sm:$0xff] %v372
                $region64: #{tpu_custom_call.1} parent=58 // loop_footer
                  %s339 = sadd.s32 1, %s335
                $region65: #{tpu_custom_call.1} parent=58 // loop_footer_branch
                  %334 = sbr.rel target = $region61
                $region66: #{tpu_custom_call.1} parent=58 // loop_exit
                  _
              $region59: #{tpu_custom_call.1} parent=43 // pred_fallthru
                _
              // Predicated region
              $region67: #{tpu_custom_call.1} parent=43 // pred_check
                _
              $region68: #{tpu_custom_call.1} parent=43 // pred_check_branch
                %375 = sbr.rel target = $region70
              $region69: #{tpu_custom_call.1} parent=43 // pred_region
                _
              $region70: #{tpu_custom_call.1} parent=43 // pred_fallthru
                _
            $region44: #{tpu_custom_call.1} parent=39 // pred_fallthru
              _
            // Predicated region
            $region45: #{tpu_custom_call.1} parent=39 // pred_check
              _
            $region46: #{tpu_custom_call.1} parent=39 // pred_check_branch
              %289 = sbr.rel target = $region48
            $region47: #{tpu_custom_call.1} parent=39 // pred_region
              %s291 = ssub.s32 256, 1
              loop: start=0, step=1, limit=1
              $region49: #{tpu_custom_call.1} parent=47 // loop_pre_header
                _
              $region50: #{tpu_custom_call.1} parent=47 // loop_header
                %s293 = sphi 0, %s297
                %p294 = scmp.ge.s32.totalorder %s293, 1
                %s298 = sphi %s283, %s283
                %s299 = sphi %s280, %s280
              $region51: #{tpu_custom_call.1} parent=47 // loop_header_branch
                %296 = sbr.rel (%p294) target = $region55
              $region52: #{tpu_custom_call.1} parent=47 // loop_body
                %v300 = vld [vmem:[%s298] sm:%s291]
                %301 = vst [vmem:[%s299] sm:%s291] %v300
                %v302 = vld [vmem:[%s298 + $0x10] sm:%s291]
                %303 = vst [vmem:[%s299 + $0x8] sm:%s291] %v302
                %v304 = vld [vmem:[%s298 + $0x20] sm:%s291]
                %305 = vst [vmem:[%s299 + $0x10] sm:%s291] %v304
                %v306 = vld [vmem:[%s298 + $0x30] sm:%s291]
                %307 = vst [vmem:[%s299 + $0x18] sm:%s291] %v306
                %v308 = vld [vmem:[%s298 + $0x40] sm:%s291]
                %309 = vst [vmem:[%s299 + $0x20] sm:%s291] %v308
                %v310 = vld [vmem:[%s298 + $0x50] sm:%s291]
                %311 = vst [vmem:[%s299 + $0x28] sm:%s291] %v310
                %v312 = vld [vmem:[%s298 + $0x60] sm:%s291]
                %313 = vst [vmem:[%s299 + $0x30] sm:%s291] %v312
                %v314 = vld [vmem:[%s298 + $0x70] sm:%s291]
                %315 = vst [vmem:[%s299 + $0x38] sm:%s291] %v314
                %v316 = vld [vmem:[%s298 + $0x80] sm:%s291]
                %317 = vst [vmem:[%s299 + $0x40] sm:%s291] %v316
                %v318 = vld [vmem:[%s298 + $0x90] sm:%s291]
                %319 = vst [vmem:[%s299 + $0x48] sm:%s291] %v318
                %v320 = vld [vmem:[%s298 + $0xa0] sm:%s291]
                %321 = vst [vmem:[%s299 + $0x50] sm:%s291] %v320
                %v322 = vld [vmem:[%s298 + $0xb0] sm:%s291]
                %323 = vst [vmem:[%s299 + $0x58] sm:%s291] %v322
                %v324 = vld [vmem:[%s298 + $0xc0] sm:%s291]
                %325 = vst [vmem:[%s299 + $0x60] sm:%s291] %v324
                %v326 = vld [vmem:[%s298 + $0xd0] sm:%s291]
                %327 = vst [vmem:[%s299 + $0x68] sm:%s291] %v326
                %v328 = vld [vmem:[%s298 + $0xe0] sm:%s291]
                %329 = vst [vmem:[%s299 + $0x70] sm:%s291] %v328
                %v330 = vld [vmem:[%s298 + $0xf0] sm:%s291]
                %331 = vst [vmem:[%s299 + $0x78] sm:%s291] %v330
              $region53: #{tpu_custom_call.1} parent=47 // loop_footer
                %s297 = sadd.s32 1, %s293
              $region54: #{tpu_custom_call.1} parent=47 // loop_footer_branch
                %292 = sbr.rel target = $region50
              $region55: #{tpu_custom_call.1} parent=47 // loop_exit
                _
            $region48: #{tpu_custom_call.1} parent=39 // pred_fallthru
              _
          $region40: #{tpu_custom_call.1} parent=35 // pred_fallthru
            _
          %376 = vnop
        $region36: #{tpu_custom_call.1} parent=27 // pred_fallthru
          _
      $region28: #{tpu_custom_call.1} parent=5 // pred_fallthru
        _
      %p377 = scmp.le.s32.totalorder 1, %s24
      %p378 = scmp.lt.s32.totalorder %s24, 3
      %p379 = pnand %p377, %p378
      %p380 = pneg %p379
      // Predicated region
      $region71: #{tpu_custom_call.1} parent=5 // pred_check
        _
      $region72: #{tpu_custom_call.1} parent=5 // pred_check_branch
        %382 = sbr.rel (%p379) target = $region74
      $region73: #{tpu_custom_call.1} parent=5 // pred_region
        %s383 = ssub.s32 %s24, 1
        %s384 = sand.u32 %s37, 1
        %s385 = scalar_lea.sflag [#allocation3], %s384
        %s386 = sand.u32 %s37, 1
        %s387 = smul.addr %s386, 8
        %s388 = scalar_lea.vmem [#allocation2], %s387
        // Predicated region
        $region75: #{tpu_custom_call.1} parent=73 // pred_check
          %p389 = pneg %p50
        $region76: #{tpu_custom_call.1} parent=73 // pred_check_branch
          %391 = sbr.rel (%p389) target = $region78
        $region77: #{tpu_custom_call.1} parent=73 // pred_region
          %392 = dma.done %s385, 128
        $region78: #{tpu_custom_call.1} parent=73 // pred_fallthru
          _
        %s393 = sand.u32 %s63, 1
        %s394 = sand.u32 %s63, 1
        %s395 = smul.addr %s394, 128
        %s396 = scalar_lea.vmem [#allocation5], %s395
        // Predicated region
        $region79: #{tpu_custom_call.1} parent=73 // pred_check
          %p397 = pneg %p76
        $region80: #{tpu_custom_call.1} parent=73 // pred_check_branch
          %399 = sbr.rel (%p397) target = $region82
        $region81: #{tpu_custom_call.1} parent=73 // pred_region
          _
        $region82: #{tpu_custom_call.1} parent=73 // pred_fallthru
          _
        // Predicated region
        $region83: #{tpu_custom_call.1} parent=73 // pred_check
          %p400 = pneg %p139
        $region84: #{tpu_custom_call.1} parent=73 // pred_check_branch
          %402 = sbr.rel (%p400) target = $region86
        $region85: #{tpu_custom_call.1} parent=73 // pred_region
          %403 = dma.done [#allocation7], 512
        $region86: #{tpu_custom_call.1} parent=73 // pred_fallthru
          _
        %s404 = sand.u32 %s37, 1
        %s405 = scalar_lea.sflag [#allocation3], %s404
        %s406 = sand.u32 %s37, 1
        %s407 = smul.addr %s406, 8
        %s408 = scalar_lea.vmem [#allocation2], %s407
        %p409 = pneg %p50
        %p410 = pneg %p47
        %s411 = sand.u32 %s63, 1
        %s412 = sand.u32 %s63, 1
        %s413 = smul.addr %s412, 128
        %s414 = scalar_lea.vmem [#allocation5], %s413
        %p415 = pneg %p76
        %p416 = pneg %p73
        %p417 = pneg %p97
        %p418 = pneg %p94
        %p419 = pneg %p118
        %p420 = pneg %p115
        %p421 = pneg %p139
        %p422 = pneg %p136
        %p423 = pneg %p165
        %p424 = pneg %p162
        %s425 = sand.u32 %s152, 1
        %s426 = scalar_lea.sflag [#allocation4], %s425
        %s427 = sand.u32 %s152, 1
        %s428 = smul.addr %s427, 64
        %s429 = scalar_lea.vmem [#allocation8], %s428
        %p430 = pneg %p191
        %p431 = pneg %p188
        %s432 = sand.u32 %s29, 1
        %s433 = scalar_lea.sflag [#allocation10], %s432
        %s434 = sand.u32 %s178, 1
        %s435 = smul.addr %s434, 2
        %s436 = scalar_lea.vmem [#allocation9], %s435
        %p437 = pneg %p217
        %p438 = pneg %p214
        %s439 = sand.u32 %s29, 1
        %s440 = scalar_lea.sflag [#allocation10], %s439
        %s441 = sand.u32 %s204, 1
        %s442 = smul.addr %s441, 2
        %s443 = scalar_lea.vmem [#allocation11], %s442
        %s444 = smul.u32 2, %s29
        %s445 = smul.u32 2, %s29
        %s446 = smul.u32 2, %s29
        %s447 = smul.u32 2, %s29
        %s448 = smul.u32 2, %s29
        %v449 = vld [vmem:[%s2] sm:$0xff]
        %v450 = vld [vmem:[%s2 + $0x8] sm:$0xff]
        %v451 = vld [vmem:[%s2 + $0x10] sm:$0xff]
        %v452 = vld [vmem:[%s2 + $0x18] sm:$0xff]
        %v453 = vld [vmem:[%s2 + $0x20] sm:$0xff]
        %v454 = vld [vmem:[%s2 + $0x28] sm:$0xff]
        %v455 = vld [vmem:[%s2 + $0x30] sm:$0xff]
        %v456 = vld [vmem:[%s2 + $0x38] sm:$0xff]
        %v457 = vld [vmem:[%s2 + $0x40] sm:$0xff]
        %v458 = vld [vmem:[%s2 + $0x48] sm:$0xff]
        %v459 = vld [vmem:[%s2 + $0x50] sm:$0xff]
        %v460 = vld [vmem:[%s2 + $0x58] sm:$0xff]
        %v461 = vld [vmem:[%s2 + $0x60] sm:$0xff]
        %v462 = vld [vmem:[%s2 + $0x68] sm:$0xff]
        %v463 = vld [vmem:[%s2 + $0x70] sm:$0xff]
        %v464 = vld [vmem:[%s2 + $0x78] sm:$0xff]
        %v465 = vld [vmem:[%s388] sm:$0xff]
        %v466 = vld [vmem:[%s3] sm:$0xff]
        %v467 = vld [vmem:[%s3 + $0x8] sm:$0xff]
        %v468 = vld [vmem:[%s3 + $0x10] sm:$0xff]
        %v469 = vld [vmem:[%s3 + $0x18] sm:$0xff]
        %v470 = vld [vmem:[%s3 + $0x20] sm:$0xff]
        %v471 = vld [vmem:[%s3 + $0x28] sm:$0xff]
        %v472 = vld [vmem:[%s3 + $0x30] sm:$0xff]
        %v473 = vld [vmem:[%s3 + $0x38] sm:$0xff]
        %v474 = vld [vmem:[%s3 + $0x40] sm:$0xff]
        %v475 = vld [vmem:[%s3 + $0x48] sm:$0xff]
        %v476 = vld [vmem:[%s3 + $0x50] sm:$0xff]
        %v477 = vld [vmem:[%s3 + $0x58] sm:$0xff]
        %v478 = vld [vmem:[%s3 + $0x60] sm:$0xff]
        %v479 = vld [vmem:[%s3 + $0x68] sm:$0xff]
        %v480 = vld [vmem:[%s3 + $0x70] sm:$0xff]
        %v481 = vld [vmem:[%s3 + $0x78] sm:$0xff]
        %483 = vset.pattern.permute.xlu0 0
        %484 = vperm.xlu0 %483, %v466
        %v485 = vpop.permute.xlu0 %484
        %488 = vset.pattern.permute.xlu0 0
        %489 = vperm.xlu0 %488, %v467
        %v490 = vpop.permute.xlu0 %489
        %493 = vset.pattern.permute.xlu0 0
        %494 = vperm.xlu0 %493, %v468
        %v495 = vpop.permute.xlu0 %494
        %498 = vset.pattern.permute.xlu0 0
        %499 = vperm.xlu0 %498, %v469
        %v500 = vpop.permute.xlu0 %499
        %503 = vset.pattern.permute.xlu0 0
        %504 = vperm.xlu0 %503, %v470
        %v505 = vpop.permute.xlu0 %504
        %508 = vset.pattern.permute.xlu0 0
        %509 = vperm.xlu0 %508, %v471
        %v510 = vpop.permute.xlu0 %509
        %513 = vset.pattern.permute.xlu0 0
        %514 = vperm.xlu0 %513, %v472
        %v515 = vpop.permute.xlu0 %514
        %518 = vset.pattern.permute.xlu0 0
        %519 = vperm.xlu0 %518, %v473
        %v520 = vpop.permute.xlu0 %519
        %523 = vset.pattern.permute.xlu0 0
        %524 = vperm.xlu0 %523, %v474
        %v525 = vpop.permute.xlu0 %524
        %528 = vset.pattern.permute.xlu0 0
        %529 = vperm.xlu0 %528, %v475
        %v530 = vpop.permute.xlu0 %529
        %533 = vset.pattern.permute.xlu0 0
        %534 = vperm.xlu0 %533, %v476
        %v535 = vpop.permute.xlu0 %534
        %538 = vset.pattern.permute.xlu0 0
        %539 = vperm.xlu0 %538, %v477
        %v540 = vpop.permute.xlu0 %539
        %543 = vset.pattern.permute.xlu0 0
        %544 = vperm.xlu0 %543, %v478
        %v545 = vpop.permute.xlu0 %544
        %548 = vset.pattern.permute.xlu0 0
        %549 = vperm.xlu0 %548, %v479
        %v550 = vpop.permute.xlu0 %549
        %553 = vset.pattern.permute.xlu0 0
        %554 = vperm.xlu0 %553, %v480
        %v555 = vpop.permute.xlu0 %554
        %558 = vset.pattern.permute.xlu0 0
        %559 = vperm.xlu0 %558, %v481
        %v560 = vpop.permute.xlu0 %559
        %v563 = vcombine.high %v465, %v465
        %vm564 = vcmask 31744
        %v566 = vsel %vm564, %v449, 0
        %v569 = vsel %vm564, %v450, 0
        %v572 = vsel %vm564, %v451, 0
        %v575 = vsel %vm564, %v452, 0
        %v578 = vsel %vm564, %v453, 0
        %v581 = vsel %vm564, %v454, 0
        %v584 = vsel %vm564, %v455, 0
        %v587 = vsel %vm564, %v456, 0
        %v590 = vsel %vm564, %v457, 0
        %v593 = vsel %vm564, %v458, 0
        %v596 = vsel %vm564, %v459, 0
        %v599 = vsel %vm564, %v460, 0
        %v602 = vsel %vm564, %v461, 0
        %v605 = vsel %vm564, %v462, 0
        %v608 = vsel %vm564, %v463, 0
        %v611 = vsel %vm564, %v464, 0
        %vm613 = vcmask 1043456
        %v614 = vsel %vm613, %v465, 0
        %v616 = vsel %vm613, %v563, 0
        %618 = vmatprep.subr.mxu0 0.0
        %619 = vmatpush1.msra.mxu0 0.0
        %620 = vmatprep.subr.mxu0 0.0
        %621 = vmatpush1.msra.mxu0 0.0
        %622 = vmatprep.subr.mxu0 0.0
        %623 = vmatpush1.msra.mxu0 0.0
        %624 = vmatprep.subr.mxu0 0.0
        %625 = vmatpush1.msra.mxu0 0.0
        %626 = vmatprep.subr.mxu0 0.0
        %627 = vmatpush1.msra.mxu0 0.0
        %628 = vmatprep.subr.mxu0 0.0
        %629 = vmatpush1.msra.mxu0 0.0
        %630 = vmatprep.subr.mxu0 0.0
        %631 = vmatpush1.msra.mxu0 0.0
        %632 = vmatprep.subr.mxu0 0.0
        %633 = vmatpush1.msra.mxu0 0.0
        %634 = vmatprep.subr.mxu0 0.0
        %635 = vmatpush1.msra.mxu0 0.0
        %636 = vmatprep.subr.mxu0 0.0
        %637 = vmatpush1.msra.mxu0 0.0
        %638 = vmatprep.subr.mxu0 0.0
        %639 = vmatpush1.msra.mxu0 0.0
        %640 = vmatprep.subr.mxu0 0.0
        %641 = vmatpush1.msra.mxu0 0.0
        %642 = vmatprep.subr.mxu0 0.0
        %643 = vmatpush1.msra.mxu0 0.0
        %644 = vmatprep.subr.mxu0 0.0
        %645 = vmatpush1.msra.mxu0 0.0
        %646 = vmatprep.subr.mxu0 0.0
        %647 = vmatpush1.msra.mxu0 0.0
        %648 = vmatprep.subr.mxu0 %v616
        %649 = vmatpush1.msra.mxu0 %v614
        %650 = vmatprep.subr.mxu0 0.0
        %651 = vmatpush2.msra.mxu0 0.0
        %652 = vmatprep.subr.mxu0 0.0
        %653 = vmatpush2.msra.mxu0 0.0
        %654 = vmatprep.subr.mxu0 0.0
        %655 = vmatpush2.msra.mxu0 0.0
        %656 = vmatprep.subr.mxu0 0.0
        %657 = vmatpush2.msra.mxu0 0.0
        %658 = vmatprep.subr.mxu0 0.0
        %659 = vmatpush2.msra.mxu0 0.0
        %660 = vmatprep.subr.mxu0 0.0
        %661 = vmatpush2.msra.mxu0 0.0
        %662 = vmatprep.subr.mxu0 0.0
        %663 = vmatpush2.msra.mxu0 0.0
        %664 = vmatprep.subr.mxu0 0.0
        %665 = vmatpush2.msra.mxu0 0.0
        %666 = vmatprep.subr.mxu0 0.0
        %667 = vmatpush2.msra.mxu0 0.0
        %668 = vmatprep.subr.mxu0 0.0
        %669 = vmatpush2.msra.mxu0 0.0
        %670 = vmatprep.subr.mxu0 0.0
        %671 = vmatpush2.msra.mxu0 0.0
        %672 = vmatprep.subr.mxu0 0.0
        %673 = vmatpush2.msra.mxu0 0.0
        %674 = vmatprep.subr.mxu0 0.0
        %675 = vmatpush2.msra.mxu0 0.0
        %676 = vmatprep.subr.mxu0 0.0
        %677 = vmatpush2.msra.mxu0 0.0
        %678 = vmatprep.subr.mxu0 0.0
        %679 = vmatpush2.msra.mxu0 0.0
        %680 = vmatprep.subr.mxu0 0.0
        %681 = vmatpush2.msra.mxu0 0.0
        %682 = vmatprep.mubr.f32.mxu0 0.0
        %683 = vmatmul.mubr.f32.gmra.mxu0 %v566
        %v684 = vpop.f32.mrf.mxu0
        %v685 = vadd.f32 %v485, %v684
        %v686 = vpop.f32.mrf.mxu0
        %v687 = vadd.f32 %v485, %v686
        %688 = vmatprep.mubr.f32.mxu0 0.0
        %689 = vmatmul.mubr.f32.gmra.mxu0 %v569
        %v690 = vpop.f32.mrf.mxu0
        %v691 = vadd.f32 %v490, %v690
        %v692 = vpop.f32.mrf.mxu0
        %v693 = vadd.f32 %v490, %v692
        %694 = vmatprep.mubr.f32.mxu0 0.0
        %695 = vmatmul.mubr.f32.gmra.mxu0 %v572
        %v696 = vpop.f32.mrf.mxu0
        %v697 = vadd.f32 %v495, %v696
        %v698 = vpop.f32.mrf.mxu0
        %v699 = vadd.f32 %v495, %v698
        %700 = vmatprep.mubr.f32.mxu0 0.0
        %701 = vmatmul.mubr.f32.gmra.mxu0 %v575
        %v702 = vpop.f32.mrf.mxu0
        %v703 = vadd.f32 %v500, %v702
        %v704 = vpop.f32.mrf.mxu0
        %v705 = vadd.f32 %v500, %v704
        %706 = vmatprep.mubr.f32.mxu0 0.0
        %707 = vmatmul.mubr.f32.gmra.mxu0 %v578
        %v708 = vpop.f32.mrf.mxu0
        %v709 = vadd.f32 %v505, %v708
        %v710 = vpop.f32.mrf.mxu0
        %v711 = vadd.f32 %v505, %v710
        %712 = vmatprep.mubr.f32.mxu0 0.0
        %713 = vmatmul.mubr.f32.gmra.mxu0 %v581
        %v714 = vpop.f32.mrf.mxu0
        %v715 = vadd.f32 %v510, %v714
        %v716 = vpop.f32.mrf.mxu0
        %v717 = vadd.f32 %v510, %v716
        %718 = vmatprep.mubr.f32.mxu0 0.0
        %719 = vmatmul.mubr.f32.gmra.mxu0 %v584
        %v720 = vpop.f32.mrf.mxu0
        %v721 = vadd.f32 %v515, %v720
        %v722 = vpop.f32.mrf.mxu0
        %v723 = vadd.f32 %v515, %v722
        %724 = vmatprep.mubr.f32.mxu0 0.0
        %725 = vmatmul.mubr.f32.gmra.mxu0 %v587
        %v726 = vpop.f32.mrf.mxu0
        %v727 = vadd.f32 %v520, %v726
        %v728 = vpop.f32.mrf.mxu0
        %v729 = vadd.f32 %v520, %v728
        %730 = vmatprep.mubr.f32.mxu0 0.0
        %731 = vmatmul.mubr.f32.gmra.mxu0 %v590
        %v732 = vpop.f32.mrf.mxu0
        %v733 = vadd.f32 %v525, %v732
        %v734 = vpop.f32.mrf.mxu0
        %v735 = vadd.f32 %v525, %v734
        %736 = vmatprep.mubr.f32.mxu0 0.0
        %737 = vmatmul.mubr.f32.gmra.mxu0 %v593
        %v738 = vpop.f32.mrf.mxu0
        %v739 = vadd.f32 %v530, %v738
        %v740 = vpop.f32.mrf.mxu0
        %v741 = vadd.f32 %v530, %v740
        %742 = vmatprep.mubr.f32.mxu0 0.0
        %743 = vmatmul.mubr.f32.gmra.mxu0 %v596
        %v744 = vpop.f32.mrf.mxu0
        %v745 = vadd.f32 %v535, %v744
        %v746 = vpop.f32.mrf.mxu0
        %v747 = vadd.f32 %v535, %v746
        %748 = vmatprep.mubr.f32.mxu0 0.0
        %749 = vmatmul.mubr.f32.gmra.mxu0 %v599
        %v750 = vpop.f32.mrf.mxu0
        %v751 = vadd.f32 %v540, %v750
        %v752 = vpop.f32.mrf.mxu0
        %v753 = vadd.f32 %v540, %v752
        %754 = vmatprep.mubr.f32.mxu0 0.0
        %755 = vmatmul.mubr.f32.gmra.mxu0 %v602
        %v756 = vpop.f32.mrf.mxu0
        %v757 = vadd.f32 %v545, %v756
        %v758 = vpop.f32.mrf.mxu0
        %v759 = vadd.f32 %v545, %v758
        %760 = vmatprep.mubr.f32.mxu0 0.0
        %761 = vmatmul.mubr.f32.gmra.mxu0 %v605
        %v762 = vpop.f32.mrf.mxu0
        %v763 = vadd.f32 %v550, %v762
        %v764 = vpop.f32.mrf.mxu0
        %v765 = vadd.f32 %v550, %v764
        %766 = vmatprep.mubr.f32.mxu0 0.0
        %767 = vmatmul.mubr.f32.gmra.mxu0 %v608
        %v768 = vpop.f32.mrf.mxu0
        %v769 = vadd.f32 %v555, %v768
        %v770 = vpop.f32.mrf.mxu0
        %v771 = vadd.f32 %v555, %v770
        %772 = vmatprep.mubr.f32.mxu0 0.0
        %773 = vmatmul.mubr.f32.gmra.mxu0 %v611
        %v774 = vpop.f32.mrf.mxu0
        %v775 = vadd.f32 %v560, %v774
        %v776 = vpop.f32.mrf.mxu0
        %v777 = vadd.f32 %v560, %v776
        %778 = vdwg.mxu0
        %v779 = vld [vmem:[%s396] sm:$0xff]
        %v780 = vld [vmem:[%s396 + $0x8] sm:$0xff]
        %v781 = vld [vmem:[%s396 + $0x10] sm:$0xff]
        %v782 = vld [vmem:[%s396 + $0x18] sm:$0xff]
        %v783 = vld [vmem:[%s396 + $0x20] sm:$0xff]
        %v784 = vld [vmem:[%s396 + $0x28] sm:$0xff]
        %v785 = vld [vmem:[%s396 + $0x30] sm:$0xff]
        %v786 = vld [vmem:[%s396 + $0x38] sm:$0xff]
        %v787 = vld [vmem:[%s396 + $0x40] sm:$0xff]
        %v788 = vld [vmem:[%s396 + $0x48] sm:$0xff]
        %v789 = vld [vmem:[%s396 + $0x50] sm:$0xff]
        %v790 = vld [vmem:[%s396 + $0x58] sm:$0xff]
        %v791 = vld [vmem:[%s396 + $0x60] sm:$0xff]
        %v792 = vld [vmem:[%s396 + $0x68] sm:$0xff]
        %v793 = vld [vmem:[%s396 + $0x70] sm:$0xff]
        %v794 = vld [vmem:[%s396 + $0x78] sm:$0xff]
        %v795 = vunpack.c.l.bf16 %v779
        %v796 = vunpack.c.h.bf16 %v779
        %v797 = vunpack.c.l.bf16 %v780
        %v798 = vunpack.c.h.bf16 %v780
        %v799 = vunpack.c.l.bf16 %v781
        %v800 = vunpack.c.h.bf16 %v781
        %v801 = vunpack.c.l.bf16 %v782
        %v802 = vunpack.c.h.bf16 %v782
        %v803 = vunpack.c.l.bf16 %v783
        %v804 = vunpack.c.h.bf16 %v783
        %v805 = vunpack.c.l.bf16 %v784
        %v806 = vunpack.c.h.bf16 %v784
        %v807 = vunpack.c.l.bf16 %v785
        %v808 = vunpack.c.h.bf16 %v785
        %v809 = vunpack.c.l.bf16 %v786
        %v810 = vunpack.c.h.bf16 %v786
        %v811 = vunpack.c.l.bf16 %v787
        %v812 = vunpack.c.h.bf16 %v787
        %v813 = vunpack.c.l.bf16 %v788
        %v814 = vunpack.c.h.bf16 %v788
        %v815 = vunpack.c.l.bf16 %v789
        %v816 = vunpack.c.h.bf16 %v789
        %v817 = vunpack.c.l.bf16 %v790
        %v818 = vunpack.c.h.bf16 %v790
        %v819 = vunpack.c.l.bf16 %v791
        %v820 = vunpack.c.h.bf16 %v791
        %v821 = vunpack.c.l.bf16 %v792
        %v822 = vunpack.c.h.bf16 %v792
        %v823 = vunpack.c.l.bf16 %v793
        %v824 = vunpack.c.h.bf16 %v793
        %v825 = vunpack.c.l.bf16 %v794
        %v826 = vunpack.c.h.bf16 %v794
        %v827 = vlaneseq
        %v828 = vshrl.u32 %v827, 7
        %v829 = vadd.s32 %v828, 8
        %v830 = vadd.s32 %v828, 16
        %v831 = vadd.s32 %v828, 24
        %v832 = vadd.s32 %v828, 32
        %v833 = vadd.s32 %v828, 40
        %v834 = vadd.s32 %v828, 48
        %v835 = vadd.s32 %v828, 56
        %v836 = vadd.s32 %v828, 64
        %v837 = vadd.s32 %v828, 72
        %v838 = vadd.s32 %v828, 80
        %v839 = vadd.s32 %v828, 88
        %v840 = vadd.s32 %v828, 96
        %v841 = vadd.s32 %v828, 104
        %v842 = vadd.s32 %v828, 112
        %v843 = vadd.s32 %v828, 120
        %v844 = vcvt.s32.f32 %v828
        %v845 = vcvt.s32.f32 %v829
        %v846 = vcvt.s32.f32 %v830
        %v847 = vcvt.s32.f32 %v831
        %v848 = vcvt.s32.f32 %v832
        %v849 = vcvt.s32.f32 %v833
        %v850 = vcvt.s32.f32 %v834
        %v851 = vcvt.s32.f32 %v835
        %v852 = vcvt.s32.f32 %v836
        %v853 = vcvt.s32.f32 %v837
        %v854 = vcvt.s32.f32 %v838
        %v855 = vcvt.s32.f32 %v839
        %v856 = vcvt.s32.f32 %v840
        %v857 = vcvt.s32.f32 %v841
        %v858 = vcvt.s32.f32 %v842
        %v859 = vcvt.s32.f32 %v843
        %v860 = vadd.f32 %v685, %v795
        %v861 = vadd.f32 %v687, %v796
        %v862 = vadd.f32 %v691, %v797
        %v863 = vadd.f32 %v693, %v798
        %v864 = vadd.f32 %v697, %v799
        %v865 = vadd.f32 %v699, %v800
        %v866 = vadd.f32 %v703, %v801
        %v867 = vadd.f32 %v705, %v802
        %v868 = vadd.f32 %v709, %v803
        %v869 = vadd.f32 %v711, %v804
        %v870 = vadd.f32 %v715, %v805
        %v871 = vadd.f32 %v717, %v806
        %v872 = vadd.f32 %v721, %v807
        %v873 = vadd.f32 %v723, %v808
        %v874 = vadd.f32 %v727, %v809
        %v875 = vadd.f32 %v729, %v810
        %v876 = vadd.f32 %v733, %v811
        %v877 = vadd.f32 %v735, %v812
        %v878 = vadd.f32 %v739, %v813
        %v879 = vadd.f32 %v741, %v814
        %v880 = vadd.f32 %v745, %v815
        %v881 = vadd.f32 %v747, %v816
        %v882 = vadd.f32 %v751, %v817
        %v883 = vadd.f32 %v753, %v818
        %v884 = vadd.f32 %v757, %v819
        %v885 = vadd.f32 %v759, %v820
        %v886 = vadd.f32 %v763, %v821
        %v887 = vadd.f32 %v765, %v822
        %v888 = vadd.f32 %v769, %v823
        %v889 = vadd.f32 %v771, %v824
        %v890 = vadd.f32 %v775, %v825
        %v891 = vadd.f32 %v777, %v826
        %v892 = vmax.f32 %v860, %v864
        %v893 = vmax.f32 %v862, %v866
        %v894 = vmax.f32 %v892, %v868
        %v895 = vmax.f32 %v893, %v870
        %v896 = vmax.f32 %v894, %v872
        %v897 = vmax.f32 %v895, %v874
        %v898 = vmax.f32 %v896, %v876
        %v899 = vmax.f32 %v897, %v878
        %v900 = vmax.f32 %v898, %v880
        %v901 = vmax.f32 %v899, %v882
        %v902 = vmax.f32 %v900, %v884
        %v903 = vmax.f32 %v901, %v886
        %v904 = vmax.f32 %v902, %v888
        %v905 = vmax.f32 %v903, %v890
        %v906 = vmax.f32 %v904, %v905
        %v907 = vrot.slane %v906, 4
        %v908 = vmax.f32 %v906, %v907
        %v909 = vrot.slane %v908, 2
        %v910 = vmax.f32 %v908, %v909
        %v911 = vrot.slane %v910, 1
        %v912 = vmax.f32 %v910, %v911
        %v913 = vmax.f32 %v861, %v865
        %v914 = vmax.f32 %v863, %v867
        %v915 = vmax.f32 %v913, %v869
        %v916 = vmax.f32 %v914, %v871
        %v917 = vmax.f32 %v915, %v873
        %v918 = vmax.f32 %v916, %v875
        %v919 = vmax.f32 %v917, %v877
        %v920 = vmax.f32 %v918, %v879
        %v921 = vmax.f32 %v919, %v881
        %v922 = vmax.f32 %v920, %v883
        %v923 = vmax.f32 %v921, %v885
        %v924 = vmax.f32 %v922, %v887
        %v925 = vmax.f32 %v923, %v889
        %v926 = vmax.f32 %v924, %v891
        %v927 = vmax.f32 %v925, %v926
        %v928 = vrot.slane %v927, 4
        %v929 = vmax.f32 %v927, %v928
        %v930 = vrot.slane %v929, 2
        %v931 = vmax.f32 %v929, %v930
        %v932 = vrot.slane %v931, 1
        %v933 = vmax.f32 %v931, %v932
        %vm934 = vcmp.eq.f32.partialorder %v860, %v912
        %vm935 = vcmp.eq.f32.partialorder %v861, %v933
        %vm936 = vcmp.eq.f32.partialorder %v862, %v912
        %vm937 = vcmp.eq.f32.partialorder %v863, %v933
        %vm938 = vcmp.eq.f32.partialorder %v864, %v912
        %vm939 = vcmp.eq.f32.partialorder %v865, %v933
        %vm940 = vcmp.eq.f32.partialorder %v866, %v912
        %vm941 = vcmp.eq.f32.partialorder %v867, %v933
        %vm942 = vcmp.eq.f32.partialorder %v868, %v912
        %vm943 = vcmp.eq.f32.partialorder %v869, %v933
        %vm944 = vcmp.eq.f32.partialorder %v870, %v912
        %vm945 = vcmp.eq.f32.partialorder %v871, %v933
        %vm946 = vcmp.eq.f32.partialorder %v872, %v912
        %vm947 = vcmp.eq.f32.partialorder %v873, %v933
        %vm948 = vcmp.eq.f32.partialorder %v874, %v912
        %vm949 = vcmp.eq.f32.partialorder %v875, %v933
        %vm950 = vcmp.eq.f32.partialorder %v876, %v912
        %vm951 = vcmp.eq.f32.partialorder %v877, %v933
        %vm952 = vcmp.eq.f32.partialorder %v878, %v912
        %vm953 = vcmp.eq.f32.partialorder %v879, %v933
        %vm954 = vcmp.eq.f32.partialorder %v880, %v912
        %vm955 = vcmp.eq.f32.partialorder %v881, %v933
        %vm956 = vcmp.eq.f32.partialorder %v882, %v912
        %vm957 = vcmp.eq.f32.partialorder %v883, %v933
        %vm958 = vcmp.eq.f32.partialorder %v884, %v912
        %vm959 = vcmp.eq.f32.partialorder %v885, %v933
        %vm960 = vcmp.eq.f32.partialorder %v886, %v912
        %vm961 = vcmp.eq.f32.partialorder %v887, %v933
        %vm962 = vcmp.eq.f32.partialorder %v888, %v912
        %vm963 = vcmp.eq.f32.partialorder %v889, %v933
        %vm964 = vcmp.eq.f32.partialorder %v890, %v912
        %vm965 = vcmp.eq.f32.partialorder %v891, %v933
        %v966 = vsel %vm934, %v844, 128.0
        %v967 = vsel %vm935, %v844, 128.0
        %v968 = vsel %vm936, %v845, 128.0
        %v969 = vsel %vm937, %v845, 128.0
        %v970 = vsel %vm938, %v846, 128.0
        %v971 = vsel %vm939, %v846, 128.0
        %v972 = vsel %vm940, %v847, 128.0
        %v973 = vsel %vm941, %v847, 128.0
        %v974 = vsel %vm942, %v848, 128.0
        %v975 = vsel %vm943, %v848, 128.0
        %v976 = vsel %vm944, %v849, 128.0
        %v977 = vsel %vm945, %v849, 128.0
        %v978 = vsel %vm946, %v850, 128.0
        %v979 = vsel %vm947, %v850, 128.0
        %v980 = vsel %vm948, %v851, 128.0
        %v981 = vsel %vm949, %v851, 128.0
        %v982 = vsel %vm950, %v852, 128.0
        %v983 = vsel %vm951, %v852, 128.0
        %v984 = vsel %vm952, %v853, 128.0
        %v985 = vsel %vm953, %v853, 128.0
        %v986 = vsel %vm954, %v854, 128.0
        %v987 = vsel %vm955, %v854, 128.0
        %v988 = vsel %vm956, %v855, 128.0
        %v989 = vsel %vm957, %v855, 128.0
        %v990 = vsel %vm958, %v856, 128.0
        %v991 = vsel %vm959, %v856, 128.0
        %v992 = vsel %vm960, %v857, 128.0
        %v993 = vsel %vm961, %v857, 128.0
        %v994 = vsel %vm962, %v858, 128.0
        %v995 = vsel %vm963, %v858, 128.0
        %v996 = vsel %vm964, %v859, 128.0
        %v997 = vsel %vm965, %v859, 128.0
        %v998 = vmin.f32 %v966, %v970
        %v999 = vmin.f32 %v968, %v972
        %v1000 = vmin.f32 %v998, %v974
        %v1001 = vmin.f32 %v999, %v976
        %v1002 = vmin.f32 %v1000, %v978
        %v1003 = vmin.f32 %v1001, %v980
        %v1004 = vmin.f32 %v1002, %v982
        %v1005 = vmin.f32 %v1003, %v984
        %v1006 = vmin.f32 %v1004, %v986
        %v1007 = vmin.f32 %v1005, %v988
        %v1008 = vmin.f32 %v1006, %v990
        %v1009 = vmin.f32 %v1007, %v992
        %v1010 = vmin.f32 %v1008, %v994
        %v1011 = vmin.f32 %v1009, %v996
        %v1012 = vmin.f32 %v1010, %v1011
        %v1013 = vrot.slane %v1012, 4
        %v1014 = vmin.f32 %v1012, %v1013
        %v1015 = vrot.slane %v1014, 2
        %v1016 = vmin.f32 %v1014, %v1015
        %v1017 = vrot.slane %v1016, 1
        %v1018 = vmin.f32 %v1016, %v1017
        %v1019 = vmin.f32 %v967, %v971
        %v1020 = vmin.f32 %v969, %v973
        %v1021 = vmin.f32 %v1019, %v975
        %v1022 = vmin.f32 %v1020, %v977
        %v1023 = vmin.f32 %v1021, %v979
        %v1024 = vmin.f32 %v1022, %v981
        %v1025 = vmin.f32 %v1023, %v983
        %v1026 = vmin.f32 %v1024, %v985
        %v1027 = vmin.f32 %v1025, %v987
        %v1028 = vmin.f32 %v1026, %v989
        %v1029 = vmin.f32 %v1027, %v991
        %v1030 = vmin.f32 %v1028, %v993
        %v1031 = vmin.f32 %v1029, %v995
        %v1032 = vmin.f32 %v1030, %v997
        %v1033 = vmin.f32 %v1031, %v1032
        %v1034 = vrot.slane %v1033, 4
        %v1035 = vmin.f32 %v1033, %v1034
        %v1036 = vrot.slane %v1035, 2
        %v1037 = vmin.f32 %v1035, %v1036
        %v1038 = vrot.slane %v1037, 1
        %v1039 = vmin.f32 %v1037, %v1038
        %vm1040 = vcmp.eq.f32.partialorder %v844, %v1018
        %vm1041 = vcmp.eq.f32.partialorder %v844, %v1039
        %vm1042 = vcmp.eq.f32.partialorder %v845, %v1018
        %vm1043 = vcmp.eq.f32.partialorder %v845, %v1039
        %vm1044 = vcmp.eq.f32.partialorder %v846, %v1018
        %vm1045 = vcmp.eq.f32.partialorder %v846, %v1039
        %vm1046 = vcmp.eq.f32.partialorder %v847, %v1018
        %vm1047 = vcmp.eq.f32.partialorder %v847, %v1039
        %vm1048 = vcmp.eq.f32.partialorder %v848, %v1018
        %vm1049 = vcmp.eq.f32.partialorder %v848, %v1039
        %vm1050 = vcmp.eq.f32.partialorder %v849, %v1018
        %vm1051 = vcmp.eq.f32.partialorder %v849, %v1039
        %vm1052 = vcmp.eq.f32.partialorder %v850, %v1018
        %vm1053 = vcmp.eq.f32.partialorder %v850, %v1039
        %vm1054 = vcmp.eq.f32.partialorder %v851, %v1018
        %vm1055 = vcmp.eq.f32.partialorder %v851, %v1039
        %vm1056 = vcmp.eq.f32.partialorder %v852, %v1018
        %vm1057 = vcmp.eq.f32.partialorder %v852, %v1039
        %vm1058 = vcmp.eq.f32.partialorder %v853, %v1018
        %vm1059 = vcmp.eq.f32.partialorder %v853, %v1039
        %vm1060 = vcmp.eq.f32.partialorder %v854, %v1018
        %vm1061 = vcmp.eq.f32.partialorder %v854, %v1039
        %vm1062 = vcmp.eq.f32.partialorder %v855, %v1018
        %vm1063 = vcmp.eq.f32.partialorder %v855, %v1039
        %vm1064 = vcmp.eq.f32.partialorder %v856, %v1018
        %vm1065 = vcmp.eq.f32.partialorder %v856, %v1039
        %vm1066 = vcmp.eq.f32.partialorder %v857, %v1018
        %vm1067 = vcmp.eq.f32.partialorder %v857, %v1039
        %vm1068 = vcmp.eq.f32.partialorder %v858, %v1018
        %vm1069 = vcmp.eq.f32.partialorder %v858, %v1039
        %vm1070 = vcmp.eq.f32.partialorder %v859, %v1018
        %vm1071 = vcmp.eq.f32.partialorder %v859, %v1039
        %v1072 = vsel %vm1040, 1, 0
        %v1073 = vsel %vm1041, 1, 0
        %v1074 = vsel %vm1042, 1, 0
        %v1075 = vsel %vm1043, 1, 0
        %v1076 = vsel %vm1044, 1, 0
        %v1077 = vsel %vm1045, 1, 0
        %v1078 = vsel %vm1046, 1, 0
        %v1079 = vsel %vm1047, 1, 0
        %v1080 = vsel %vm1048, 1, 0
        %v1081 = vsel %vm1049, 1, 0
        %v1082 = vsel %vm1050, 1, 0
        %v1083 = vsel %vm1051, 1, 0
        %v1084 = vsel %vm1052, 1, 0
        %v1085 = vsel %vm1053, 1, 0
        %v1086 = vsel %vm1054, 1, 0
        %v1087 = vsel %vm1055, 1, 0
        %v1088 = vsel %vm1056, 1, 0
        %v1089 = vsel %vm1057, 1, 0
        %v1090 = vsel %vm1058, 1, 0
        %v1091 = vsel %vm1059, 1, 0
        %v1092 = vsel %vm1060, 1, 0
        %v1093 = vsel %vm1061, 1, 0
        %v1094 = vsel %vm1062, 1, 0
        %v1095 = vsel %vm1063, 1, 0
        %v1096 = vsel %vm1064, 1, 0
        %v1097 = vsel %vm1065, 1, 0
        %v1098 = vsel %vm1066, 1, 0
        %v1099 = vsel %vm1067, 1, 0
        %v1100 = vsel %vm1068, 1, 0
        %v1101 = vsel %vm1069, 1, 0
        %v1102 = vsel %vm1070, 1, 0
        %v1103 = vsel %vm1071, 1, 0
        %v1104 = vcvt.s32.f32 %v1072
        %v1105 = vcvt.s32.f32 %v1073
        %v1106 = vcvt.s32.f32 %v1074
        %v1107 = vcvt.s32.f32 %v1075
        %v1108 = vcvt.s32.f32 %v1076
        %v1109 = vcvt.s32.f32 %v1077
        %v1110 = vcvt.s32.f32 %v1078
        %v1111 = vcvt.s32.f32 %v1079
        %v1112 = vcvt.s32.f32 %v1080
        %v1113 = vcvt.s32.f32 %v1081
        %v1114 = vcvt.s32.f32 %v1082
        %v1115 = vcvt.s32.f32 %v1083
        %v1116 = vcvt.s32.f32 %v1084
        %v1117 = vcvt.s32.f32 %v1085
        %v1118 = vcvt.s32.f32 %v1086
        %v1119 = vcvt.s32.f32 %v1087
        %v1120 = vcvt.s32.f32 %v1088
        %v1121 = vcvt.s32.f32 %v1089
        %v1122 = vcvt.s32.f32 %v1090
        %v1123 = vcvt.s32.f32 %v1091
        %v1124 = vcvt.s32.f32 %v1092
        %v1125 = vcvt.s32.f32 %v1093
        %v1126 = vcvt.s32.f32 %v1094
        %v1127 = vcvt.s32.f32 %v1095
        %v1128 = vcvt.s32.f32 %v1096
        %v1129 = vcvt.s32.f32 %v1097
        %v1130 = vcvt.s32.f32 %v1098
        %v1131 = vcvt.s32.f32 %v1099
        %v1132 = vcvt.s32.f32 %v1100
        %v1133 = vcvt.s32.f32 %v1101
        %v1134 = vcvt.s32.f32 %v1102
        %v1135 = vcvt.s32.f32 %v1103
        %v1136 = vld [vmem:[#allocation6] sm:$0xff]
        %v1137 = vld [vmem:[#allocation6 + $0x8] sm:$0xff]
        %v1138 = vld [vmem:[#allocation6 + $0x10] sm:$0xff]
        %v1139 = vld [vmem:[#allocation6 + $0x18] sm:$0xff]
        %1140 = vmatprep.subr.mxu0 %v1135
        %1141 = vmatpush1.msra.mxu0 %v1134
        %1142 = vmatprep.subr.mxu0 %v1133
        %1143 = vmatpush1.msra.mxu0 %v1132
        %1144 = vmatprep.subr.mxu0 %v1131
        %1145 = vmatpush1.msra.mxu0 %v1130
        %1146 = vmatprep.subr.mxu0 %v1129
        %1147 = vmatpush1.msra.mxu0 %v1128
        %1148 = vmatprep.subr.mxu0 %v1127
        %1149 = vmatpush1.msra.mxu0 %v1126
        %1150 = vmatprep.subr.mxu0 %v1125
        %1151 = vmatpush1.msra.mxu0 %v1124
        %1152 = vmatprep.subr.mxu0 %v1123
        %1153 = vmatpush1.msra.mxu0 %v1122
        %1154 = vmatprep.subr.mxu0 %v1121
        %1155 = vmatpush1.msra.mxu0 %v1120
        %1156 = vmatprep.subr.mxu0 %v1119
        %1157 = vmatpush1.msra.mxu0 %v1118
        %1158 = vmatprep.subr.mxu0 %v1117
        %1159 = vmatpush1.msra.mxu0 %v1116
        %1160 = vmatprep.subr.mxu0 %v1115
        %1161 = vmatpush1.msra.mxu0 %v1114
        %1162 = vmatprep.subr.mxu0 %v1113
        %1163 = vmatpush1.msra.mxu0 %v1112
        %1164 = vmatprep.subr.mxu0 %v1111
        %1165 = vmatpush1.msra.mxu0 %v1110
        %1166 = vmatprep.subr.mxu0 %v1109
        %1167 = vmatpush1.msra.mxu0 %v1108
        %1168 = vmatprep.subr.mxu0 %v1107
        %1169 = vmatpush1.msra.mxu0 %v1106
        %1170 = vmatprep.subr.mxu0 %v1105
        %1171 = vmatpush1.msra.mxu0 %v1104
        %1172 = vmatprep.subr.mxu0 0.0
        %1173 = vmatpush2.msra.mxu0 0.0
        %1174 = vmatprep.subr.mxu0 0.0
        %1175 = vmatpush2.msra.mxu0 0.0
        %1176 = vmatprep.subr.mxu0 0.0
        %1177 = vmatpush2.msra.mxu0 0.0
        %1178 = vmatprep.subr.mxu0 0.0
        %1179 = vmatpush2.msra.mxu0 0.0
        %1180 = vmatprep.subr.mxu0 0.0
        %1181 = vmatpush2.msra.mxu0 0.0
        %1182 = vmatprep.subr.mxu0 0.0
        %1183 = vmatpush2.msra.mxu0 0.0
        %1184 = vmatprep.subr.mxu0 0.0
        %1185 = vmatpush2.msra.mxu0 0.0
        %1186 = vmatprep.subr.mxu0 0.0
        %1187 = vmatpush2.msra.mxu0 0.0
        %1188 = vmatprep.subr.mxu0 0.0
        %1189 = vmatpush2.msra.mxu0 0.0
        %1190 = vmatprep.subr.mxu0 0.0
        %1191 = vmatpush2.msra.mxu0 0.0
        %1192 = vmatprep.subr.mxu0 0.0
        %1193 = vmatpush2.msra.mxu0 0.0
        %1194 = vmatprep.subr.mxu0 0.0
        %1195 = vmatpush2.msra.mxu0 0.0
        %1196 = vmatprep.subr.mxu0 0.0
        %1197 = vmatpush2.msra.mxu0 0.0
        %1198 = vmatprep.subr.mxu0 0.0
        %1199 = vmatpush2.msra.mxu0 0.0
        %1200 = vmatprep.subr.mxu0 0.0
        %1201 = vmatpush2.msra.mxu0 0.0
        %1202 = vmatprep.subr.mxu0 0.0
        %1203 = vmatpush2.msra.mxu0 0.0
        %1204 = vmatprep.mubr.f32.mxu0 0.0
        %1205 = vmatmul.mubr.f32.gmra.mxu0 %v1136
        %v1206 = vpop.f32.mrf.mxu0
        %v1207 = vadd.f32 0.0, %v1206
        %v1208 = vpop.f32.mrf.mxu0
        %v1209 = vadd.f32 0.0, %v1208
        %1210 = vmatprep.mubr.f32.mxu0 0.0
        %1211 = vmatmul.mubr.f32.gmra.mxu0 %v1137
        %v1212 = vpop.f32.mrf.mxu0
        %v1213 = vadd.f32 0.0, %v1212
        %v1214 = vpop.f32.mrf.mxu0
        %v1215 = vadd.f32 0.0, %v1214
        %1216 = vmatprep.mubr.f32.mxu0 0.0
        %1217 = vmatmul.mubr.f32.gmra.mxu0 %v1138
        %v1218 = vpop.f32.mrf.mxu0
        %v1219 = vadd.f32 0.0, %v1218
        %v1220 = vpop.f32.mrf.mxu0
        %v1221 = vadd.f32 0.0, %v1220
        %1222 = vmatprep.mubr.f32.mxu0 0.0
        %1223 = vmatmul.mubr.f32.gmra.mxu0 %v1139
        %v1224 = vpop.f32.mrf.mxu0
        %v1225 = vadd.f32 0.0, %v1224
        %v1226 = vpop.f32.mrf.mxu0
        %v1227 = vadd.f32 0.0, %v1226
        %1228 = vdwg.mxu0
        %1229 = vst [vmem:[%s429] sm:$0xff] %v1207
        %1230 = vst [vmem:[%s429 + $0x8] sm:$0xff] %v1209
        %1231 = vst [vmem:[%s429 + $0x10] sm:$0xff] %v1213
        %1232 = vst [vmem:[%s429 + $0x18] sm:$0xff] %v1215
        %1233 = vst [vmem:[%s429 + $0x20] sm:$0xff] %v1219
        %1234 = vst [vmem:[%s429 + $0x28] sm:$0xff] %v1221
        %1235 = vst [vmem:[%s429 + $0x30] sm:$0xff] %v1225
        %1236 = vst [vmem:[%s429 + $0x38] sm:$0xff] %v1227
        %v1237 = vmax.f32 %v685, %v697
        %v1238 = vmax.f32 %v691, %v703
        %v1239 = vmax.f32 %v1237, %v709
        %v1240 = vmax.f32 %v1238, %v715
        %v1241 = vmax.f32 %v1239, %v721
        %v1242 = vmax.f32 %v1240, %v727
        %v1243 = vmax.f32 %v1241, %v733
        %v1244 = vmax.f32 %v1242, %v739
        %v1245 = vmax.f32 %v1243, %v745
        %v1246 = vmax.f32 %v1244, %v751
        %v1247 = vmax.f32 %v1245, %v757
        %v1248 = vmax.f32 %v1246, %v763
        %v1249 = vmax.f32 %v1247, %v769
        %v1250 = vmax.f32 %v1248, %v775
        %v1251 = vmax.f32 %v1249, %v1250
        %v1252 = vrot.slane %v1251, 4
        %v1253 = vmax.f32 %v1251, %v1252
        %v1254 = vrot.slane %v1253, 2
        %v1255 = vmax.f32 %v1253, %v1254
        %v1256 = vrot.slane %v1255, 1
        %v1257 = vmax.f32 %v1255, %v1256
        %v1258 = vmax.f32 %v687, %v699
        %v1259 = vmax.f32 %v693, %v705
        %v1260 = vmax.f32 %v1258, %v711
        %v1261 = vmax.f32 %v1259, %v717
        %v1262 = vmax.f32 %v1260, %v723
        %v1263 = vmax.f32 %v1261, %v729
        %v1264 = vmax.f32 %v1262, %v735
        %v1265 = vmax.f32 %v1263, %v741
        %v1266 = vmax.f32 %v1264, %v747
        %v1267 = vmax.f32 %v1265, %v753
        %v1268 = vmax.f32 %v1266, %v759
        %v1269 = vmax.f32 %v1267, %v765
        %v1270 = vmax.f32 %v1268, %v771
        %v1271 = vmax.f32 %v1269, %v777
        %v1272 = vmax.f32 %v1270, %v1271
        %v1273 = vrot.slane %v1272, 4
        %v1274 = vmax.f32 %v1272, %v1273
        %v1275 = vrot.slane %v1274, 2
        %v1276 = vmax.f32 %v1274, %v1275
        %v1277 = vrot.slane %v1276, 1
        %v1278 = vmax.f32 %v1276, %v1277
        %v1279 = vsub.f32 %v685, %v1257
        %v1280 = vsub.f32 %v687, %v1278
        %v1281 = vsub.f32 %v691, %v1257
        %v1282 = vsub.f32 %v693, %v1278
        %v1283 = vsub.f32 %v697, %v1257
        %v1284 = vsub.f32 %v699, %v1278
        %v1285 = vsub.f32 %v703, %v1257
        %v1286 = vsub.f32 %v705, %v1278
        %v1287 = vsub.f32 %v709, %v1257
        %v1288 = vsub.f32 %v711, %v1278
        %v1289 = vsub.f32 %v715, %v1257
        %v1290 = vsub.f32 %v717, %v1278
        %v1291 = vsub.f32 %v721, %v1257
        %v1292 = vsub.f32 %v723, %v1278
        %v1293 = vsub.f32 %v727, %v1257
        %v1294 = vsub.f32 %v729, %v1278
        %v1295 = vsub.f32 %v733, %v1257
        %v1296 = vsub.f32 %v735, %v1278
        %v1297 = vsub.f32 %v739, %v1257
        %v1298 = vsub.f32 %v741, %v1278
        %v1299 = vsub.f32 %v745, %v1257
        %v1300 = vsub.f32 %v747, %v1278
        %v1301 = vsub.f32 %v751, %v1257
        %v1302 = vsub.f32 %v753, %v1278
        %v1303 = vsub.f32 %v757, %v1257
        %v1304 = vsub.f32 %v759, %v1278
        %v1305 = vsub.f32 %v763, %v1257
        %v1306 = vsub.f32 %v765, %v1278
        %v1307 = vsub.f32 %v769, %v1257
        %v1308 = vsub.f32 %v771, %v1278
        %v1309 = vsub.f32 %v775, %v1257
        %v1310 = vsub.f32 %v777, %v1278
        %v1311 = vmul.f32 %v1279, 1.442695
        %v1312 = vpow.pop %v1311
        %v1313 = vmul.f32 %v1280, 1.442695
        %v1314 = vpow.pop %v1313
        %v1315 = vmul.f32 %v1281, 1.442695
        %v1316 = vpow.pop %v1315
        %v1317 = vmul.f32 %v1282, 1.442695
        %v1318 = vpow.pop %v1317
        %v1319 = vmul.f32 %v1283, 1.442695
        %v1320 = vpow.pop %v1319
        %v1321 = vmul.f32 %v1284, 1.442695
        %v1322 = vpow.pop %v1321
        %v1323 = vmul.f32 %v1285, 1.442695
        %v1324 = vpow.pop %v1323
        %v1325 = vmul.f32 %v1286, 1.442695
        %v1326 = vpow.pop %v1325
        %v1327 = vmul.f32 %v1287, 1.442695
        %v1328 = vpow.pop %v1327
        %v1329 = vmul.f32 %v1288, 1.442695
        %v1330 = vpow.pop %v1329
        %v1331 = vmul.f32 %v1289, 1.442695
        %v1332 = vpow.pop %v1331
        %v1333 = vmul.f32 %v1290, 1.442695
        %v1334 = vpow.pop %v1333
        %v1335 = vmul.f32 %v1291, 1.442695
        %v1336 = vpow.pop %v1335
        %v1337 = vmul.f32 %v1292, 1.442695
        %v1338 = vpow.pop %v1337
        %v1339 = vmul.f32 %v1293, 1.442695
        %v1340 = vpow.pop %v1339
        %v1341 = vmul.f32 %v1294, 1.442695
        %v1342 = vpow.pop %v1341
        %v1343 = vmul.f32 %v1295, 1.442695
        %v1344 = vpow.pop %v1343
        %v1345 = vmul.f32 %v1296, 1.442695
        %v1346 = vpow.pop %v1345
        %v1347 = vmul.f32 %v1297, 1.442695
        %v1348 = vpow.pop %v1347
        %v1349 = vmul.f32 %v1298, 1.442695
        %v1350 = vpow.pop %v1349
        %v1351 = vmul.f32 %v1299, 1.442695
        %v1352 = vpow.pop %v1351
        %v1353 = vmul.f32 %v1300, 1.442695
        %v1354 = vpow.pop %v1353
        %v1355 = vmul.f32 %v1301, 1.442695
        %v1356 = vpow.pop %v1355
        %v1357 = vmul.f32 %v1302, 1.442695
        %v1358 = vpow.pop %v1357
        %v1359 = vmul.f32 %v1303, 1.442695
        %v1360 = vpow.pop %v1359
        %v1361 = vmul.f32 %v1304, 1.442695
        %v1362 = vpow.pop %v1361
        %v1363 = vmul.f32 %v1305, 1.442695
        %v1364 = vpow.pop %v1363
        %v1365 = vmul.f32 %v1306, 1.442695
        %v1366 = vpow.pop %v1365
        %v1367 = vmul.f32 %v1307, 1.442695
        %v1368 = vpow.pop %v1367
        %v1369 = vmul.f32 %v1308, 1.442695
        %v1370 = vpow.pop %v1369
        %v1371 = vmul.f32 %v1309, 1.442695
        %v1372 = vpow.pop %v1371
        %v1373 = vmul.f32 %v1310, 1.442695
        %v1374 = vpow.pop %v1373
        %v1375 = vadd.f32 %v1312, %v1316
        %v1376 = vadd.f32 %v1375, %v1320
        %v1377 = vadd.f32 %v1376, %v1324
        %v1378 = vadd.f32 %v1377, %v1328
        %v1379 = vadd.f32 %v1378, %v1332
        %v1380 = vadd.f32 %v1379, %v1336
        %v1381 = vadd.f32 %v1380, %v1340
        %v1382 = vadd.f32 %v1381, %v1344
        %v1383 = vadd.f32 %v1382, %v1348
        %v1384 = vadd.f32 %v1383, %v1352
        %v1385 = vadd.f32 %v1384, %v1356
        %v1386 = vadd.f32 %v1385, %v1360
        %v1387 = vadd.f32 %v1386, %v1364
        %v1388 = vadd.f32 %v1387, %v1368
        %v1389 = vadd.f32 %v1388, %v1372
        %v1390 = vrot.slane %v1389, 4
        %v1391 = vadd.f32 %v1389, %v1390
        %v1392 = vrot.slane %v1391, 2
        %v1393 = vadd.f32 %v1391, %v1392
        %v1394 = vrot.slane %v1393, 1
        %v1395 = vadd.f32 %v1393, %v1394
        %v1396 = vadd.f32 %v1314, %v1318
        %v1397 = vadd.f32 %v1396, %v1322
        %v1398 = vadd.f32 %v1397, %v1326
        %v1399 = vadd.f32 %v1398, %v1330
        %v1400 = vadd.f32 %v1399, %v1334
        %v1401 = vadd.f32 %v1400, %v1338
        %v1402 = vadd.f32 %v1401, %v1342
        %v1403 = vadd.f32 %v1402, %v1346
        %v1404 = vadd.f32 %v1403, %v1350
        %v1405 = vadd.f32 %v1404, %v1354
        %v1406 = vadd.f32 %v1405, %v1358
        %v1407 = vadd.f32 %v1406, %v1362
        %v1408 = vadd.f32 %v1407, %v1366
        %v1409 = vadd.f32 %v1408, %v1370
        %v1410 = vadd.f32 %v1409, %v1374
        %v1411 = vrot.slane %v1410, 4
        %v1412 = vadd.f32 %v1410, %v1411
        %v1413 = vrot.slane %v1412, 2
        %v1414 = vadd.f32 %v1412, %v1413
        %v1415 = vrot.slane %v1414, 1
        %v1416 = vadd.f32 %v1414, %v1415
        %v1417 = vmul.f32 %v1312, %v1279
        %v1418 = vmul.f32 %v1314, %v1280
        %v1419 = vmul.f32 %v1316, %v1281
        %v1420 = vmul.f32 %v1318, %v1282
        %v1421 = vmul.f32 %v1320, %v1283
        %v1422 = vmul.f32 %v1322, %v1284
        %v1423 = vmul.f32 %v1324, %v1285
        %v1424 = vmul.f32 %v1326, %v1286
        %v1425 = vmul.f32 %v1328, %v1287
        %v1426 = vmul.f32 %v1330, %v1288
        %v1427 = vmul.f32 %v1332, %v1289
        %v1428 = vmul.f32 %v1334, %v1290
        %v1429 = vmul.f32 %v1336, %v1291
        %v1430 = vmul.f32 %v1338, %v1292
        %v1431 = vmul.f32 %v1340, %v1293
        %v1432 = vmul.f32 %v1342, %v1294
        %v1433 = vmul.f32 %v1344, %v1295
        %v1434 = vmul.f32 %v1346, %v1296
        %v1435 = vmul.f32 %v1348, %v1297
        %v1436 = vmul.f32 %v1350, %v1298
        %v1437 = vmul.f32 %v1352, %v1299
        %v1438 = vmul.f32 %v1354, %v1300
        %v1439 = vmul.f32 %v1356, %v1301
        %v1440 = vmul.f32 %v1358, %v1302
        %v1441 = vmul.f32 %v1360, %v1303
        %v1442 = vmul.f32 %v1362, %v1304
        %v1443 = vmul.f32 %v1364, %v1305
        %v1444 = vmul.f32 %v1366, %v1306
        %v1445 = vmul.f32 %v1368, %v1307
        %v1446 = vmul.f32 %v1370, %v1308
        %v1447 = vmul.f32 %v1372, %v1309
        %v1448 = vmul.f32 %v1374, %v1310
        %v1449 = vadd.f32 %v1417, %v1419
        %v1450 = vadd.f32 %v1449, %v1421
        %v1451 = vadd.f32 %v1450, %v1423
        %v1452 = vadd.f32 %v1451, %v1425
        %v1453 = vadd.f32 %v1452, %v1427
        %v1454 = vadd.f32 %v1453, %v1429
        %v1455 = vadd.f32 %v1454, %v1431
        %v1456 = vadd.f32 %v1455, %v1433
        %v1457 = vadd.f32 %v1456, %v1435
        %v1458 = vadd.f32 %v1457, %v1437
        %v1459 = vadd.f32 %v1458, %v1439
        %v1460 = vadd.f32 %v1459, %v1441
        %v1461 = vadd.f32 %v1460, %v1443
        %v1462 = vadd.f32 %v1461, %v1445
        %v1463 = vadd.f32 %v1462, %v1447
        %v1464 = vrot.slane %v1463, 4
        %v1465 = vadd.f32 %v1463, %v1464
        %v1466 = vrot.slane %v1465, 2
        %v1467 = vadd.f32 %v1465, %v1466
        %v1468 = vrot.slane %v1467, 1
        %v1469 = vadd.f32 %v1467, %v1468
        %v1470 = vadd.f32 %v1418, %v1420
        %v1471 = vadd.f32 %v1470, %v1422
        %v1472 = vadd.f32 %v1471, %v1424
        %v1473 = vadd.f32 %v1472, %v1426
        %v1474 = vadd.f32 %v1473, %v1428
        %v1475 = vadd.f32 %v1474, %v1430
        %v1476 = vadd.f32 %v1475, %v1432
        %v1477 = vadd.f32 %v1476, %v1434
        %v1478 = vadd.f32 %v1477, %v1436
        %v1479 = vadd.f32 %v1478, %v1438
        %v1480 = vadd.f32 %v1479, %v1440
        %v1481 = vadd.f32 %v1480, %v1442
        %v1482 = vadd.f32 %v1481, %v1444
        %v1483 = vadd.f32 %v1482, %v1446
        %v1484 = vadd.f32 %v1483, %v1448
        %v1485 = vrot.slane %v1484, 4
        %v1486 = vadd.f32 %v1484, %v1485
        %v1487 = vrot.slane %v1486, 2
        %v1488 = vadd.f32 %v1486, %v1487
        %v1489 = vrot.slane %v1488, 1
        %v1490 = vadd.f32 %v1488, %v1489
        %v1491 = vrcp.pop %v1395
        %v1492 = vrcp.pop %v1416
        %v1493 = vmul.f32 %v1469, %v1491
        %v1494 = vmul.f32 %v1490, %v1492
        %v1495 = vlog2.pop %v1395
        %v1496 = vmul.f32 %v1495, 0.6931472
        %v1497 = vlog2.pop %v1416
        %v1498 = vmul.f32 %v1497, 0.6931472
        %v1499 = vsub.f32 %v1493, %v1496
        %v1500 = vsub.f32 %v1494, %v1498
        %v1501 = vadd.f32 %v1499, 4.8520303
        %v1502 = vadd.f32 %v1500, 4.8520303
        %v1505 = vcombine.low %v1501, %v1502
        %v1507 = vunpack.c.l.s4 1966171168
        %v1508 = vunpack.c.0.s8 %v1507
        %v1509 = vlaneseq
        %v1510 = vshrl.u32 %v1509, 7
        %v1511 = vsub.s32 %v1508, %v1510
        %v1512 = vrot.slane %v1505, %v1511
        %v1514 = vunpack.c.l.s4 1966171168
        %v1515 = vunpack.c.0.s8 %v1514
        %v1516 = vlaneseq
        %v1517 = vshrl.u32 %v1516, 7
        %v1518 = vsub.s32 %v1515, %v1517
        %v1519 = vrot.slane %v1512, %v1518
        %v1521 = vlaneseq
        %vm1522 = vcmp.ge.s32.totalorder %v1521, 0
        %vm1523 = vcmp.lt.s32.totalorder %v1521, 256
        %vm1524 = vmand %vm1522, %vm1523
        %1525 = vst.msk [vmem:[%s436] sm:$0x3] %vm1524, %v1519
        %v1526 = vcvt.f32.s32.to.zero.pseudo %v1018
        %v1527 = vcvt.f32.s32.to.zero.pseudo %v1039
        %v1528 = vcombine.low %v1526, %v1527
        %v1530 = vunpack.c.l.s4 1966171168
        %v1531 = vunpack.c.0.s8 %v1530
        %v1532 = vlaneseq
        %v1533 = vshrl.u32 %v1532, 7
        %v1534 = vsub.s32 %v1531, %v1533
        %v1535 = vrot.slane %v1528, %v1534
        %v1537 = vunpack.c.l.s4 1966171168
        %v1538 = vunpack.c.0.s8 %v1537
        %v1539 = vlaneseq
        %v1540 = vshrl.u32 %v1539, 7
        %v1541 = vsub.s32 %v1538, %v1540
        %v1542 = vrot.slane %v1535, %v1541
        %1543 = vst.msk [vmem:[%s443] sm:$0x3] %vm1524, %v1542
        %s1544 = sand.u32 %s152, 1
        %s1545 = scalar_lea.sflag [#allocation4], %s1544
        %s1546 = sand.u32 %s152, 1
        %s1547 = smul.addr %s1546, 64
        %s1548 = scalar_lea.vmem [#allocation8], %s1547
        %s1549 = sand.u32 %s29, 1
        %s1550 = scalar_lea.sflag [#allocation10], %s1549
        %s1551 = sand.u32 %s178, 1
        %s1552 = smul.addr %s1551, 2
        %s1553 = scalar_lea.vmem [#allocation9], %s1552
        %s1554 = sand.u32 %s29, 1
        %s1555 = scalar_lea.sflag [#allocation10], %s1554
        %s1556 = sand.u32 %s204, 1
        %s1557 = smul.addr %s1556, 2
        %s1558 = scalar_lea.vmem [#allocation11], %s1557
        // Predicated region
        $region87: #{tpu_custom_call.1} parent=73 // pred_check
          %p1559 = pneg %p162
        $region88: #{tpu_custom_call.1} parent=73 // pred_check_branch
          %1561 = sbr.rel (%p1559) target = $region90
        $region89: #{tpu_custom_call.1} parent=73 // pred_region
          %s1562 = smul.u32 2, %s29
          %s1564 = ssub.s32 1024, 1024
          %1565 = vsyncadd %s1545, %s1564
          %s1566 = smul.addr %s1562, 128
          %s1567 = scalar_lea.hbm %s5, %s1566
          %s1568 = sshll.u32 %s1548, 4
          %s1569 = int_to_ptr.vmem [resolvable:$true] %s1568
          %1574 = dma.vmem_to_hbm [thread:$0]  %s1569, 1024, %s1567, %s1545, 256, 512, 16
        $region90: #{tpu_custom_call.1} parent=73 // pred_fallthru
          _
        // Predicated region
        $region91: #{tpu_custom_call.1} parent=73 // pred_check
          %p1575 = pneg %p188
        $region92: #{tpu_custom_call.1} parent=73 // pred_check_branch
          %1577 = sbr.rel (%p1575) target = $region94
        $region93: #{tpu_custom_call.1} parent=73 // pred_region
          %s1578 = smul.u32 2, %s29
          %s1580 = ssub.s32 32, 32
          %1581 = vsyncadd %s1550, %s1580
          %s1582 = smul.addr %s1578, 16
          %s1583 = scalar_lea.hbm %s6, %s1582
          %s1585 = sshll.u32 %s1553, 4
          %s1586 = int_to_ptr.vmem [resolvable:$true] %s1585
          %1588 = dma.vmem_to_hbm [thread:$0]  %s1586, 32, %s1583, %s1550
        $region94: #{tpu_custom_call.1} parent=73 // pred_fallthru
          _
        // Predicated region
        $region95: #{tpu_custom_call.1} parent=73 // pred_check
          %p1589 = pneg %p214
        $region96: #{tpu_custom_call.1} parent=73 // pred_check_branch
          %1591 = sbr.rel (%p1589) target = $region98
        $region97: #{tpu_custom_call.1} parent=73 // pred_region
          %s1592 = smul.u32 2, %s29
          %s1594 = ssub.s32 32, 32
          %1595 = vsyncadd %s1555, %s1594
          %s1596 = smul.addr %s1592, 16
          %s1597 = scalar_lea.hbm %s7, %s1596
          %s1599 = sshll.u32 %s1558, 4
          %s1600 = int_to_ptr.vmem [resolvable:$true] %s1599
          %1602 = dma.vmem_to_hbm [thread:$0]  %s1600, 32, %s1597, %s1555
        $region98: #{tpu_custom_call.1} parent=73 // pred_fallthru
          _
      $region74: #{tpu_custom_call.1} parent=5 // pred_fallthru
        _
      %p1603 = scmp.le.s32.totalorder 2, %s24
      // Predicated region
      $region99: #{tpu_custom_call.1} parent=5 // pred_check
        %p1604 = pneg %p1603
      $region100: #{tpu_custom_call.1} parent=5 // pred_check_branch
        %1606 = sbr.rel (%p1604) target = $region102
      $region101: #{tpu_custom_call.1} parent=5 // pred_region
        %s1607 = ssub.s32 %s24, 2
        // Predicated region
        $region103: #{tpu_custom_call.1} parent=101 // pred_check
          %p1608 = pneg %p168
        $region104: #{tpu_custom_call.1} parent=101 // pred_check_branch
          %1610 = sbr.rel (%p1608) target = $region106
        $region105: #{tpu_custom_call.1} parent=101 // pred_region
          %s1611 = sand.u32 %s153, 1
          %s1612 = scalar_lea.sflag [#allocation4], %s1611
          %s1613 = sand.u32 %s153, 1
          %s1614 = smul.addr %s1613, 64
          %s1615 = scalar_lea.vmem [#allocation8], %s1614
          %1616 = dma.done %s1612, 1024
        $region106: #{tpu_custom_call.1} parent=101 // pred_fallthru
          _
        // Predicated region
        $region107: #{tpu_custom_call.1} parent=101 // pred_check
          %p1617 = pneg %p194
        $region108: #{tpu_custom_call.1} parent=101 // pred_check_branch
          %1619 = sbr.rel (%p1617) target = $region110
        $region109: #{tpu_custom_call.1} parent=101 // pred_region
          %s1620 = sand.u32 %s30, 1
          %s1621 = scalar_lea.sflag [#allocation10], %s1620
          %s1622 = sand.u32 %s179, 1
          %s1623 = smul.addr %s1622, 2
          %s1624 = scalar_lea.vmem [#allocation9], %s1623
          %1625 = dma.done %s1621, 32
        $region110: #{tpu_custom_call.1} parent=101 // pred_fallthru
          _
        // Predicated region
        $region111: #{tpu_custom_call.1} parent=101 // pred_check
          %p1626 = pneg %p220
        $region112: #{tpu_custom_call.1} parent=101 // pred_check_branch
          %1628 = sbr.rel (%p1626) target = $region114
        $region113: #{tpu_custom_call.1} parent=101 // pred_region
          %s1629 = sand.u32 %s30, 1
          %s1630 = scalar_lea.sflag [#allocation10], %s1629
          %s1631 = sand.u32 %s205, 1
          %s1632 = smul.addr %s1631, 2
          %s1633 = scalar_lea.vmem [#allocation11], %s1632
          %1634 = dma.done %s1630, 32
        $region114: #{tpu_custom_call.1} parent=101 // pred_fallthru
          _
      $region102: #{tpu_custom_call.1} parent=5 // pred_fallthru
        _
    $region6: #{tpu_custom_call.1} parent=1 // loop_footer
      %s28 = sadd.s32 1, %s24
    $region7: #{tpu_custom_call.1} parent=1 // loop_footer_branch
      %23 = sbr.rel target = $region3
    $region8: #{tpu_custom_call.1} parent=1 // loop_exit
      _
    %1635 = vsyncpa [#allocation3], 1
    %s1636 = scalar_lea.sflag [#allocation3], 1
    %1637 = vsyncpa %s1636, 1
    %1638 = vsyncpa [#allocation7], 1
    %1639 = vsyncpa [#allocation4], 1
    %s1640 = scalar_lea.sflag [#allocation4], 1
    %1641 = vsyncpa %s1640, 1
    %1642 = vsyncpa [#allocation10], 1
    %s1643 = scalar_lea.sflag [#allocation10], 1
    %1644 = vsyncpa %s1643, 1

</llo_original>
